<compile_context>
chip_gen: v7x
topology: tpu7x:2x2x1
jax: 0.10.0
libtpu: 0.0.40
codegen_flags: <defaults>
</compile_context>

<pallas_src>
import jax
import jax.numpy as jnp
from jax import lax
from jax.experimental import pallas as pl
from jax.experimental.pallas import tpu as pltpu

DIM_EMBEDDING_CAR = 110
DIM_EMBEDDING_CAT = 18
DIM_INPUT = DIM_EMBEDDING_CAR + DIM_EMBEDDING_CAT   # = 128, exactly one lane-width


def _rnn_seq_kernel(ids_ref, cat_ref,                    # scalar-prefetch (SMEM)
                    emb_car_ref, emb_cat_ref,            # padded embedding tables (VMEM)
                    hc0_ref, wih_ref, whh_ref, bias_ref, wout_ref,
                    out_ref, hcT_ref,
                    x_sc, gx_sc, hs_sc):
    """Whole-sequence embedding + LSTM + output head in one invocation.

    ids_ref:  (T,)      character ids (SMEM)
    cat_ref:  (1,)      category id (SMEM)
    emb_car:  (V, 128)  car-embedding table, cols 0:110 live, 110:128 zero
    emb_cat:  (C, 128)  cat-embedding table, cols 0:110 zero, 110:128 live
    hc0:      (2, H)    rows [h0; c0]
    wih:      (128,4H)  transposed PyTorch weight_ih_l0
    whh:      (H, 4H)   transposed PyTorch weight_hh_l0
    bias:     (2, Bpad) row0[:4H]=b_ih+b_hh ; row1[:Opad]=Linear bias (-1e30 in padded cols)
    wout:     (H, Opad) transposed Linear weight, zero-padded to 128 lanes
    out_ref:  (T, Opad) log-probs (padded cols are garbage, sliced off outside)
    hcT:      (2, H)    rows [h_T; c_T]
    x_sc:     (T, 128)  scratch: assembled embedded inputs
    gx_sc:    (T, 4H)   scratch: precomputed input projection
    hs_sc:    (T, H)    scratch: collected hidden states
    """
    H = whh_ref.shape[0]
    T = out_ref.shape[0]
    O_pad = out_ref.shape[1]

    # ---- Prologue: in-kernel embedding "gather + concat" (concat == add of the two
    #      complementary zero-padded 128-wide rows).
    cat_row = emb_cat_ref[pl.ds(cat_ref[0], 1), :]                       # (1, 128)
    for t in range(T):                                                   # static, small T
        x_sc[pl.ds(t, 1), :] = emb_car_ref[pl.ds(ids_ref[t], 1), :] + cat_row

    # Input projection for all T steps at once (off the serial path).
    b_lstm = bias_ref[0:1, 0:4 * H]
    gx_sc[...] = jnp.dot(x_sc[...], wih_ref[...],
                         preferred_element_type=jnp.float32) + b_lstm

    whh = whh_ref[...]

    # Hoisted per-gate-block scale: 0.5 for i/f/o columns (sigmoid via tanh), 1.0 for g.
    col = lax.broadcasted_iota(jnp.int32, (1, 4 * H), 1)
    g_scale = jnp.where((col >= 2 * H) & (col < 3 * H),
                        jnp.float32(1.0), jnp.float32(0.5))

    # ---- Serial recurrence: per step only h @ W_hh + one EUP push for the gates
    #      (+ one for tanh(c)) + cheap VPU math.
    def step(t, carry):
        h, c = carry
        gates = gx_sc[pl.ds(t, 1), :] + jnp.dot(h, whh,
                                                preferred_element_type=jnp.float32)  # (1,4H)
        # sigmoid(x) = 0.5*(1 + tanh(x/2)) — exact; one EUP push instead of two.
        y = jnp.tanh(gates * g_scale)
        i_g = 0.5 * (y[:, 0:H] + 1.0)
        f_g = 0.5 * (y[:, H:2 * H] + 1.0)
        g_g = y[:, 2 * H:3 * H]
        o_g = 0.5 * (y[:, 3 * H:4 * H] + 1.0)

        c_new = f_g * c + i_g * g_g
        h_new = o_g * jnp.tanh(c_new)

        hs_sc[pl.ds(t, 1), :] = h_new
        return (h_new, c_new)

    hT, cT = lax.fori_loop(0, T, step,
                           (hc0_ref[0:1, :], hc0_ref[1:2, :]),
                           unroll=min(T, 8))

    # Final state written once (single consolidated output).
    hcT_ref[...] = jnp.concatenate([hT, cT], axis=0)

    # ---- Epilogue (off the serial path): batched Linear + LogSoftmax over all T rows.
    b_out = bias_ref[1:2, 0:O_pad]
    logits = jnp.dot(hs_sc[...], wout_ref[...],
                     preferred_element_type=jnp.float32) + b_out          # (T, Opad)
    m = jnp.max(logits, axis=-1, keepdims=True)
    lse = m + jnp.log(jnp.sum(jnp.exp(logits - m), axis=-1, keepdims=True))
    out_ref[...] = logits - lse


def prepare_params(params):
    """One-time packing of raw (PyTorch-layout) params into the kernel layout."""
    emb_car = params["emb_car"].astype(jnp.float32)      # (vocab, 110)
    emb_cat = params["emb_cat"].astype(jnp.float32)      # (n_cat, 18)
    wih = params["w_ih"].astype(jnp.float32)             # (128, 4H)
    whh = params["w_hh"].astype(jnp.float32)             # (H, 4H)
    b = params["b"].astype(jnp.float32)                  # (1, 4H)
    wout = params["w_out"].astype(jnp.float32)           # (H, O)
    bout = params["b_out"].astype(jnp.float32)           # (1, O)

    H = whh.shape[0]
    O = wout.shape[1]
    O_pad = pl.cdiv(O, 128) * 128
    B_pad = max(4 * H, O_pad)
    vocab = emb_car.shape[0]
    n_cat = emb_cat.shape[0]

    # Complementary zero-padding so in-kernel "concat" is just an add of two 128-wide rows.
    emb_car_p = jnp.zeros((vocab, DIM_INPUT), jnp.float32).at[:, :DIM_EMBEDDING_CAR].set(emb_car)
    emb_cat_p = jnp.zeros((n_cat, DIM_INPUT), jnp.float32).at[:, DIM_EMBEDDING_CAR:].set(emb_cat)

    # Output head padded to 128 lanes; padded logits get -1e30 so they vanish in the
    # (max-shifted) softmax. Safe in f32 only.
    wout_p = jnp.zeros((H, O_pad), jnp.float32).at[:, :O].set(wout)
    bias_p = jnp.zeros((2, B_pad), jnp.float32)
    bias_p = bias_p.at[0, :4 * H].set(b[0])
    bias_p = bias_p.at[1, :O_pad].set(-1e30)
    bias_p = bias_p.at[1, :O].set(bout[0])

    return {"emb_car_p": emb_car_p, "emb_cat_p": emb_cat_p,
            "w_ih": wih, "w_hh": whh, "bias_p": bias_p, "w_out_p": wout_p,
            "H": H, "O": O, "O_pad": O_pad}


def rnn_forward(prepared, category, input_ids, hidden):
    """Mirrors RNN.forward(category, input, hidden) of the PyTorch module."""
    H, O, O_pad = prepared["H"], prepared["O"], prepared["O_pad"]
    T = input_ids.shape[0]
    h0, c0 = hidden                                        # each (1, 1, H)

    hc0 = jnp.concatenate([h0.reshape(1, H), c0.reshape(1, H)], axis=0).astype(jnp.float32)
    ids = input_ids.astype(jnp.int32)
    cat = jnp.asarray(category, jnp.int32).reshape(1)

    emb_car_p = prepared["emb_car_p"]
    emb_cat_p = prepared["emb_cat_p"]
    wih, whh = prepared["w_ih"], prepared["w_hh"]
    bias_p, wout_p = prepared["bias_p"], prepared["w_out_p"]
    vocab = emb_car_p.shape[0]
    n_cat = emb_cat_p.shape[0]
    B_pad = bias_p.shape[1]

    def zmap(i, ids_ref, cat_ref):        # single grid point; prefetch refs are positional
        return (0, 0)

    in_specs = [
        pl.BlockSpec((vocab, DIM_INPUT), zmap),      # emb_car (padded)
        pl.BlockSpec((n_cat, DIM_INPUT), zmap),      # emb_cat (padded)
        pl.BlockSpec((2, H), zmap),                  # [h0; c0]
        pl.BlockSpec((DIM_INPUT, 4 * H), zmap),      # W_ih
        pl.BlockSpec((H, 4 * H), zmap),              # W_hh
        pl.BlockSpec((2, B_pad), zmap),              # [b_lstm; b_out (padded)]
        pl.BlockSpec((H, O_pad), zmap),              # W_out (padded)
    ]
    out_specs = [
        pl.BlockSpec((T, O_pad), zmap),              # log-probs (whole sequence)
        pl.BlockSpec((2, H), zmap),                  # [h_T; c_T]
    ]
    out_shapes = (
        jax.ShapeDtypeStruct((T, O_pad), jnp.float32),
        jax.ShapeDtypeStruct((2, H), jnp.float32),
    )

    logprobs_p, hcT = pl.pallas_call(
        _rnn_seq_kernel,
        out_shape=out_shapes,
        grid_spec=pltpu.PrefetchScalarGridSpec(
            num_scalar_prefetch=2,                   # input_ids, category -> SMEM
            grid=(1,),                               # single invocation; loop is inside
            in_specs=in_specs,
            out_specs=out_specs,
            scratch_shapes=[pltpu.VMEM((T, DIM_INPUT), jnp.float32),   # assembled x rows
                            pltpu.VMEM((T, 4 * H), jnp.float32),       # gates_x
                            pltpu.VMEM((T, H), jnp.float32)],          # hidden-state rows
        ),
        compiler_params=pltpu.CompilerParams(
            dimension_semantics=("arbitrary",)),
    )(ids, cat, emb_car_p, emb_cat_p, hc0, wih, whh, bias_p, wout_p)

    logprobs = logprobs_p[:, :O]
    hT = hcT[0:1].reshape(1, 1, H)
    cT = hcT[1:2].reshape(1, 1, H)
    return logprobs, (hT, cT)


def ref_forward(params, category, input_ids, hidden):
    """Pure-JAX reference of the same forward (for correctness check)."""
    emb_car, emb_cat = params["emb_car"], params["emb_cat"]
    wih, whh, b = params["w_ih"], params["w_hh"], params["b"]
    wout, bout = params["w_out"], params["b_out"]
    h, c = hidden[0].reshape(1, -1), hidden[1].reshape(1, -1)
    H = whh.shape[0]
    T = input_ids.shape[0]

    car = emb_car[input_ids]
    cat = jnp.broadcast_to(emb_cat[category].reshape(1, -1), (T, DIM_EMBEDDING_CAT))
    x = jnp.concatenate([car, cat], axis=1).astype(jnp.float32)

    outs = []
    for t in range(T):
        gates = x[t:t + 1] @ wih + h @ whh + b
        i_g = jax.nn.sigmoid(gates[:, 0:H])
        f_g = jax.nn.sigmoid(gates[:, H:2 * H])
        g_g = jnp.tanh(gates[:, 2 * H:3 * H])
        o_g = jax.nn.sigmoid(gates[:, 3 * H:4 * H])
        c = f_g * c + i_g * g_g
        h = o_g * jnp.tanh(c)
        logits = h @ wout + bout
        outs.append(jax.nn.log_softmax(logits, axis=1))
    return jnp.concatenate(outs, axis=0), (h.reshape(1, 1, H), c.reshape(1, 1, H))


def init_params(key, input_size, n_categories, hidden_size, output_size):
    ks = jax.random.split(key, 8)
    IN = DIM_EMBEDDING_CAR + DIM_EMBEDDING_CAT
    H = hidden_size
    s = lambda n: 1.0 / jnp.sqrt(n)
    return {
        "emb_car": jax.random.normal(ks[0], (input_size, DIM_EMBEDDING_CAR), jnp.float32),
        "emb_cat": jax.random.normal(ks[1], (n_categories, DIM_EMBEDDING_CAT), jnp.float32),
        # PyTorch LSTM stores weight_ih (4H, IN); we keep the transposed (IN, 4H) layout.
        "w_ih": jax.random.uniform(ks[2], (IN, 4 * H), jnp.float32, -s(H), s(H)),
        "w_hh": jax.random.uniform(ks[3], (H, 4 * H), jnp.float32, -s(H), s(H)),
        "b": jax.random.uniform(ks[4], (1, 4 * H), jnp.float32, -s(H), s(H)),
        "w_out": jax.random.uniform(ks[5], (H, output_size), jnp.float32, -s(H), s(H)),
        "b_out": jax.random.uniform(ks[6], (1, output_size), jnp.float32, -s(H), s(H)),
    }


if __name__ == "__main__":
    INPUT_SIZE = 30       # character vocab size
    N_CATEGORIES = 5      # stand-in for len(all_categories)
    HIDDEN_SIZE = 32
    OUTPUT_SIZE = 64
    T = 8                 # sequence length

    key = jax.random.PRNGKey(0)
    kp, ki, kc = jax.random.split(key, 3)

    params = init_params(kp, INPUT_SIZE, N_CATEGORIES, HIDDEN_SIZE, OUTPUT_SIZE)
    prepared = prepare_params(params)          # one-time packing (per-call overhead removed)

    input_ids = jax.random.randint(ki, (T,), 0, INPUT_SIZE, dtype=jnp.int32)
    category = jax.random.randint(kc, (), 0, N_CATEGORIES, dtype=jnp.int32)
    hidden = (jnp.zeros((1, 1, HIDDEN_SIZE), jnp.float32),   # initHidden()
              jnp.zeros((1, 1, HIDDEN_SIZE), jnp.float32))

    out, (hT, cT) = rnn_forward(prepared, category, input_ids, hidden)
    jax.block_until_ready((out, hT, cT))

    out_ref, (hT_ref, cT_ref) = ref_forward(params, category, input_ids, hidden)
    assert out.shape == (T, OUTPUT_SIZE) and hT.shape == (1, 1, HIDDEN_SIZE)
    assert jnp.allclose(out, out_ref, atol=1e-3, rtol=1e-3)
    assert jnp.allclose(hT, hT_ref, atol=1e-3, rtol=1e-3)
    assert jnp.allclose(cT, cT_ref, atol=1e-3, rtol=1e-3)

    print("KERNEL_OK")
</pallas_src>

<mosaic_0001>
module attributes {stable_mosaic.version = 11 : i64} {
  func.func @_rnn_seq_kernel(%arg0: i32, %arg1: memref<8xi32, #tpu.memory_space<smem>>, %arg2: memref<1xi32, #tpu.memory_space<smem>>, %arg3: memref<30x128xf32, #tpu.memory_space<vmem>>, %arg4: memref<5x128xf32, #tpu.memory_space<vmem>>, %arg5: memref<2x32xf32, #tpu.memory_space<vmem>>, %arg6: memref<128x128xf32, #tpu.memory_space<vmem>>, %arg7: memref<32x128xf32, #tpu.memory_space<vmem>>, %arg8: memref<2x128xf32, #tpu.memory_space<vmem>>, %arg9: memref<32x128xf32, #tpu.memory_space<vmem>>, %arg10: memref<8x128xf32, #tpu.memory_space<vmem>>, %arg11: memref<2x32xf32, #tpu.memory_space<vmem>>, %arg12: memref<8x128xf32, #tpu.memory_space<vmem>>, %arg13: memref<8x128xf32, #tpu.memory_space<vmem>>, %arg14: memref<8x32xf32, #tpu.memory_space<vmem>>) attributes {dimension_semantics = [#tpu.dimension_semantics<arbitrary>], iteration_bounds = array<i64: 1>, scalar_prefetch = 2 : i64, scratch_operands = 3 : i64, tpu.core_type = #tpu.core_type<tc>, window_params = [{pipeline_mode = #tpu.pipeline_mode<synchronous>, transform_indices = @transform_0, window_bounds = array<i64: 30, 128>}, {pipeline_mode = #tpu.pipeline_mode<synchronous>, transform_indices = @transform_1, window_bounds = array<i64: 5, 128>}, {pipeline_mode = #tpu.pipeline_mode<synchronous>, transform_indices = @transform_2, window_bounds = array<i64: 2, 32>}, {pipeline_mode = #tpu.pipeline_mode<synchronous>, transform_indices = @transform_3, window_bounds = array<i64: 128, 128>}, {pipeline_mode = #tpu.pipeline_mode<synchronous>, transform_indices = @transform_4, window_bounds = array<i64: 32, 128>}, {pipeline_mode = #tpu.pipeline_mode<synchronous>, transform_indices = @transform_5, window_bounds = array<i64: 2, 128>}, {pipeline_mode = #tpu.pipeline_mode<synchronous>, transform_indices = @transform_6, window_bounds = array<i64: 32, 128>}, {pipeline_mode = #tpu.pipeline_mode<synchronous>, transform_indices = @transform_7, window_bounds = array<i64: 8, 128>}, {pipeline_mode = #tpu.pipeline_mode<synchronous>, transform_indices = @transform_8, window_bounds = array<i64: 2, 32>}]} {
    %c0 = arith.constant 0 : index
    %0 = memref.load %arg2[%c0] : memref<1xi32, #tpu.memory_space<smem>>
    %1 = arith.index_cast %0 : i32 to index
    %c0_0 = arith.constant 0 : index
    %2 = vector.load %arg4[%1, %c0_0] : memref<5x128xf32, #tpu.memory_space<vmem>>, vector<1x128xf32>
    %c0_1 = arith.constant 0 : index
    %3 = memref.load %arg1[%c0_1] : memref<8xi32, #tpu.memory_space<smem>>
    %4 = arith.index_cast %3 : i32 to index
    %c0_2 = arith.constant 0 : index
    %5 = vector.load %arg3[%4, %c0_2] : memref<30x128xf32, #tpu.memory_space<vmem>>, vector<1x128xf32>
    %6 = arith.addf %5, %2 : vector<1x128xf32>
    %c0_3 = arith.constant 0 : index
    %c0_4 = arith.constant 0 : index
    %7 = vector.load %arg12[%c0_3, %c0_4] : memref<8x128xf32, #tpu.memory_space<vmem>>, vector<1x128xf32>
    tpu.vector_store %arg12[%c0_3, %c0_4], %6 {strides = array<i32>} : memref<8x128xf32, #tpu.memory_space<vmem>>, vector<1x128xf32>,
    %c1 = arith.constant 1 : index
    %8 = memref.load %arg1[%c1] : memref<8xi32, #tpu.memory_space<smem>>
    %9 = arith.index_cast %8 : i32 to index
    %c0_5 = arith.constant 0 : index
    %10 = vector.load %arg3[%9, %c0_5] : memref<30x128xf32, #tpu.memory_space<vmem>>, vector<1x128xf32>
    %11 = arith.addf %10, %2 : vector<1x128xf32>
    %c1_6 = arith.constant 1 : index
    %c0_7 = arith.constant 0 : index
    %12 = vector.load %arg12[%c1_6, %c0_7] : memref<8x128xf32, #tpu.memory_space<vmem>>, vector<1x128xf32>
    tpu.vector_store %arg12[%c1_6, %c0_7], %11 {strides = array<i32>} : memref<8x128xf32, #tpu.memory_space<vmem>>, vector<1x128xf32>,
    %c2 = arith.constant 2 : index
    %13 = memref.load %arg1[%c2] : memref<8xi32, #tpu.memory_space<smem>>
    %14 = arith.index_cast %13 : i32 to index
    %c0_8 = arith.constant 0 : index
    %15 = vector.load %arg3[%14, %c0_8] : memref<30x128xf32, #tpu.memory_space<vmem>>, vector<1x128xf32>
    %16 = arith.addf %15, %2 : vector<1x128xf32>
    %c2_9 = arith.constant 2 : index
    %c0_10 = arith.constant 0 : index
    %17 = vector.load %arg12[%c2_9, %c0_10] : memref<8x128xf32, #tpu.memory_space<vmem>>, vector<1x128xf32>
    tpu.vector_store %arg12[%c2_9, %c0_10], %16 {strides = array<i32>} : memref<8x128xf32, #tpu.memory_space<vmem>>, vector<1x128xf32>,
    %c3 = arith.constant 3 : index
    %18 = memref.load %arg1[%c3] : memref<8xi32, #tpu.memory_space<smem>>
    %19 = arith.index_cast %18 : i32 to index
    %c0_11 = arith.constant 0 : index
    %20 = vector.load %arg3[%19, %c0_11] : memref<30x128xf32, #tpu.memory_space<vmem>>, vector<1x128xf32>
    %21 = arith.addf %20, %2 : vector<1x128xf32>
    %c3_12 = arith.constant 3 : index
    %c0_13 = arith.constant 0 : index
    %22 = vector.load %arg12[%c3_12, %c0_13] : memref<8x128xf32, #tpu.memory_space<vmem>>, vector<1x128xf32>
    tpu.vector_store %arg12[%c3_12, %c0_13], %21 {strides = array<i32>} : memref<8x128xf32, #tpu.memory_space<vmem>>, vector<1x128xf32>,
    %c4 = arith.constant 4 : index
    %23 = memref.load %arg1[%c4] : memref<8xi32, #tpu.memory_space<smem>>
    %24 = arith.index_cast %23 : i32 to index
    %c0_14 = arith.constant 0 : index
    %25 = vector.load %arg3[%24, %c0_14] : memref<30x128xf32, #tpu.memory_space<vmem>>, vector<1x128xf32>
    %26 = arith.addf %25, %2 : vector<1x128xf32>
    %c4_15 = arith.constant 4 : index
    %c0_16 = arith.constant 0 : index
    %27 = vector.load %arg12[%c4_15, %c0_16] : memref<8x128xf32, #tpu.memory_space<vmem>>, vector<1x128xf32>
    tpu.vector_store %arg12[%c4_15, %c0_16], %26 {strides = array<i32>} : memref<8x128xf32, #tpu.memory_space<vmem>>, vector<1x128xf32>,
    %c5 = arith.constant 5 : index
    %28 = memref.load %arg1[%c5] : memref<8xi32, #tpu.memory_space<smem>>
    %29 = arith.index_cast %28 : i32 to index
    %c0_17 = arith.constant 0 : index
    %30 = vector.load %arg3[%29, %c0_17] : memref<30x128xf32, #tpu.memory_space<vmem>>, vector<1x128xf32>
    %31 = arith.addf %30, %2 : vector<1x128xf32>
    %c5_18 = arith.constant 5 : index
    %c0_19 = arith.constant 0 : index
    %32 = vector.load %arg12[%c5_18, %c0_19] : memref<8x128xf32, #tpu.memory_space<vmem>>, vector<1x128xf32>
    tpu.vector_store %arg12[%c5_18, %c0_19], %31 {strides = array<i32>} : memref<8x128xf32, #tpu.memory_space<vmem>>, vector<1x128xf32>,
    %c6 = arith.constant 6 : index
    %33 = memref.load %arg1[%c6] : memref<8xi32, #tpu.memory_space<smem>>
    %34 = arith.index_cast %33 : i32 to index
    %c0_20 = arith.constant 0 : index
    %35 = vector.load %arg3[%34, %c0_20] : memref<30x128xf32, #tpu.memory_space<vmem>>, vector<1x128xf32>
    %36 = arith.addf %35, %2 : vector<1x128xf32>
    %c6_21 = arith.constant 6 : index
    %c0_22 = arith.constant 0 : index
    %37 = vector.load %arg12[%c6_21, %c0_22] : memref<8x128xf32, #tpu.memory_space<vmem>>, vector<1x128xf32>
    tpu.vector_store %arg12[%c6_21, %c0_22], %36 {strides = array<i32>} : memref<8x128xf32, #tpu.memory_space<vmem>>, vector<1x128xf32>,
    %c7 = arith.constant 7 : index
    %38 = memref.load %arg1[%c7] : memref<8xi32, #tpu.memory_space<smem>>
    %39 = arith.index_cast %38 : i32 to index
    %c0_23 = arith.constant 0 : index
    %40 = vector.load %arg3[%39, %c0_23] : memref<30x128xf32, #tpu.memory_space<vmem>>, vector<1x128xf32>
    %41 = arith.addf %40, %2 : vector<1x128xf32>
    %c7_24 = arith.constant 7 : index
    %c0_25 = arith.constant 0 : index
    %42 = vector.load %arg12[%c7_24, %c0_25] : memref<8x128xf32, #tpu.memory_space<vmem>>, vector<1x128xf32>
    tpu.vector_store %arg12[%c7_24, %c0_25], %41 {strides = array<i32>} : memref<8x128xf32, #tpu.memory_space<vmem>>, vector<1x128xf32>,
    %c0_26 = arith.constant 0 : index
    %c0_27 = arith.constant 0 : index
    %43 = vector.load %arg8[%c0_26, %c0_27] : memref<2x128xf32, #tpu.memory_space<vmem>>, vector<1x128xf32>
    %c0_28 = arith.constant 0 : index
    %c0_29 = arith.constant 0 : index
    %44 = vector.load %arg12[%c0_28, %c0_29] : memref<8x128xf32, #tpu.memory_space<vmem>>, vector<8x128xf32>
    %c0_30 = arith.constant 0 : index
    %c0_31 = arith.constant 0 : index
    %45 = vector.load %arg6[%c0_30, %c0_31] : memref<128x128xf32, #tpu.memory_space<vmem>>, vector<128x128xf32>
    %cst = arith.constant dense<0.000000e+00> : vector<8x128xf32>
    %46 = tpu.matmul %44, %45, %cst {dimension_numbers = #tpu.dot_dimension_numbers<[1], [0], [0], [1], [0, 0, 1, 1], [], []>} : vector<8x128xf32>, vector<128x128xf32>, vector<8x128xf32> -> vector<8x128xf32>
    %47 = vector.broadcast %43 : vector<1x128xf32> to vector<8x128xf32>
    %48 = arith.addf %46, %47 : vector<8x128xf32>
    %c0_32 = arith.constant 0 : index
    %c0_33 = arith.constant 0 : index
    %49 = vector.load %arg13[%c0_32, %c0_33] : memref<8x128xf32, #tpu.memory_space<vmem>>, vector<8x128xf32>
    tpu.vector_store %arg13[%c0_32, %c0_33], %48 {strides = array<i32>} : memref<8x128xf32, #tpu.memory_space<vmem>>, vector<8x128xf32>,
    %c0_34 = arith.constant 0 : index
    %c0_35 = arith.constant 0 : index
    %50 = vector.load %arg7[%c0_34, %c0_35] : memref<32x128xf32, #tpu.memory_space<vmem>>, vector<32x128xf32>
    %51 = tpu.iota {dimensions = array<i32: 1>} : vector<1x128xi32>
    %c64_i32 = arith.constant 64 : i32
    %52 = vector.broadcast %c64_i32 : i32 to vector<1x128xi32>
    %53 = arith.cmpi sge, %51, %52 : vector<1x128xi32>
    %c96_i32 = arith.constant 96 : i32
    %54 = vector.broadcast %c96_i32 : i32 to vector<1x128xi32>
    %55 = arith.cmpi slt, %51, %54 : vector<1x128xi32>
    %56 = arith.andi %53, %55 : vector<1x128xi1>
    %cst_36 = arith.constant 1.000000e+00 : f32
    %cst_37 = arith.constant 5.000000e-01 : f32
    %57 = vector.broadcast %cst_36 : f32 to vector<1x128xf32>
    %58 = vector.broadcast %cst_37 : f32 to vector<1x128xf32>
    %59 = arith.select %56, %57, %58 : vector<1x128xi1>, vector<1x128xf32>
    %c0_38 = arith.constant 0 : index
    %c0_39 = arith.constant 0 : index
    %60 = vector.load %arg5[%c0_38, %c0_39] : memref<2x32xf32, #tpu.memory_space<vmem>>, vector<1x32xf32>
    %c1_40 = arith.constant 1 : index
    %c0_41 = arith.constant 0 : index
    %61 = vector.load %arg5[%c1_40, %c0_41] : memref<2x32xf32, #tpu.memory_space<vmem>>, vector<1x32xf32>
    %c0_i32 = arith.constant 0 : i32
    %62 = arith.index_cast %c0_i32 : i32 to index
    %c0_42 = arith.constant 0 : index
    %63 = vector.load %arg13[%62, %c0_42] : memref<8x128xf32, #tpu.memory_space<vmem>>, vector<1x128xf32>
    %cst_43 = arith.constant dense<0.000000e+00> : vector<1x128xf32>
    %64 = tpu.matmul %60, %50, %cst_43 {dimension_numbers = #tpu.dot_dimension_numbers<[1], [0], [0], [1], [0, 0, 1, 1], [], []>} : vector<1x32xf32>, vector<32x128xf32>, vector<1x128xf32> -> vector<1x128xf32>
    %65 = arith.addf %63, %64 : vector<1x128xf32>
    %66 = arith.mulf %65, %59 : vector<1x128xf32>
    %67 = math.tanh %66 : vector<1x128xf32>
    %68 = vector.extract_strided_slice %67 {offsets = [0, 0], sizes = [1, 32], strides = [1, 1]} : vector<1x128xf32> to vector<1x32xf32>
    %cst_44 = arith.constant 1.000000e+00 : f32
    %69 = vector.broadcast %cst_44 : f32 to vector<1x32xf32>
    %70 = arith.addf %68, %69 : vector<1x32xf32>
    %cst_45 = arith.constant 5.000000e-01 : f32
    %71 = vector.broadcast %cst_45 : f32 to vector<1x32xf32>
    %72 = arith.mulf %71, %70 : vector<1x32xf32>
    %73 = vector.extract_strided_slice %67 {offsets = [0, 32], sizes = [1, 32], strides = [1, 1]} : vector<1x128xf32> to vector<1x32xf32>
    %cst_46 = arith.constant 1.000000e+00 : f32
    %74 = vector.broadcast %cst_46 : f32 to vector<1x32xf32>
    %75 = arith.addf %73, %74 : vector<1x32xf32>
    %cst_47 = arith.constant 5.000000e-01 : f32
    %76 = vector.broadcast %cst_47 : f32 to vector<1x32xf32>
    %77 = arith.mulf %76, %75 : vector<1x32xf32>
    %78 = vector.extract_strided_slice %67 {offsets = [0, 64], sizes = [1, 32], strides = [1, 1]} : vector<1x128xf32> to vector<1x32xf32>
    %79 = vector.extract_strided_slice %67 {offsets = [0, 96], sizes = [1, 32], strides = [1, 1]} : vector<1x128xf32> to vector<1x32xf32>
    %cst_48 = arith.constant 1.000000e+00 : f32
    %80 = vector.broadcast %cst_48 : f32 to vector<1x32xf32>
    %81 = arith.addf %79, %80 : vector<1x32xf32>
    %cst_49 = arith.constant 5.000000e-01 : f32
    %82 = vector.broadcast %cst_49 : f32 to vector<1x32xf32>
    %83 = arith.mulf %82, %81 : vector<1x32xf32>
    %84 = arith.mulf %77, %61 : vector<1x32xf32>
    %85 = arith.mulf %72, %78 : vector<1x32xf32>
    %86 = arith.addf %84, %85 : vector<1x32xf32>
    %87 = math.tanh %86 : vector<1x32xf32>
    %88 = arith.mulf %83, %87 : vector<1x32xf32>
    %89 = arith.index_cast %c0_i32 : i32 to index
    %c0_50 = arith.constant 0 : index
    %90 = vector.load %arg14[%89, %c0_50] : memref<8x32xf32, #tpu.memory_space<vmem>>, vector<1x32xf32>
    tpu.vector_store %arg14[%89, %c0_50], %88 {strides = array<i32>} : memref<8x32xf32, #tpu.memory_space<vmem>>, vector<1x32xf32>,
    %c1_i32 = arith.constant 1 : i32
    %91 = arith.index_cast %c1_i32 : i32 to index
    %c0_51 = arith.constant 0 : index
    %92 = vector.load %arg13[%91, %c0_51] : memref<8x128xf32, #tpu.memory_space<vmem>>, vector<1x128xf32>
    %cst_52 = arith.constant dense<0.000000e+00> : vector<1x128xf32>
    %93 = tpu.matmul %88, %50, %cst_52 {dimension_numbers = #tpu.dot_dimension_numbers<[1], [0], [0], [1], [0, 0, 1, 1], [], []>} : vector<1x32xf32>, vector<32x128xf32>, vector<1x128xf32> -> vector<1x128xf32>
    %94 = arith.addf %92, %93 : vector<1x128xf32>
    %95 = arith.mulf %94, %59 : vector<1x128xf32>
    %96 = math.tanh %95 : vector<1x128xf32>
    %97 = vector.extract_strided_slice %96 {offsets = [0, 0], sizes = [1, 32], strides = [1, 1]} : vector<1x128xf32> to vector<1x32xf32>
    %cst_53 = arith.constant 1.000000e+00 : f32
    %98 = vector.broadcast %cst_53 : f32 to vector<1x32xf32>
    %99 = arith.addf %97, %98 : vector<1x32xf32>
    %cst_54 = arith.constant 5.000000e-01 : f32
    %100 = vector.broadcast %cst_54 : f32 to vector<1x32xf32>
    %101 = arith.mulf %100, %99 : vector<1x32xf32>
    %102 = vector.extract_strided_slice %96 {offsets = [0, 32], sizes = [1, 32], strides = [1, 1]} : vector<1x128xf32> to vector<1x32xf32>
    %cst_55 = arith.constant 1.000000e+00 : f32
    %103 = vector.broadcast %cst_55 : f32 to vector<1x32xf32>
    %104 = arith.addf %102, %103 : vector<1x32xf32>
    %cst_56 = arith.constant 5.000000e-01 : f32
    %105 = vector.broadcast %cst_56 : f32 to vector<1x32xf32>
    %106 = arith.mulf %105, %104 : vector<1x32xf32>
    %107 = vector.extract_strided_slice %96 {offsets = [0, 64], sizes = [1, 32], strides = [1, 1]} : vector<1x128xf32> to vector<1x32xf32>
    %108 = vector.extract_strided_slice %96 {offsets = [0, 96], sizes = [1, 32], strides = [1, 1]} : vector<1x128xf32> to vector<1x32xf32>
    %cst_57 = arith.constant 1.000000e+00 : f32
    %109 = vector.broadcast %cst_57 : f32 to vector<1x32xf32>
    %110 = arith.addf %108, %109 : vector<1x32xf32>
    %cst_58 = arith.constant 5.000000e-01 : f32
    %111 = vector.broadcast %cst_58 : f32 to vector<1x32xf32>
    %112 = arith.mulf %111, %110 : vector<1x32xf32>
    %113 = arith.mulf %106, %86 : vector<1x32xf32>
    %114 = arith.mulf %101, %107 : vector<1x32xf32>
    %115 = arith.addf %113, %114 : vector<1x32xf32>
    %116 = math.tanh %115 : vector<1x32xf32>
    %117 = arith.mulf %112, %116 : vector<1x32xf32>
    %118 = arith.index_cast %c1_i32 : i32 to index
    %c0_59 = arith.constant 0 : index
    %119 = vector.load %arg14[%118, %c0_59] : memref<8x32xf32, #tpu.memory_space<vmem>>, vector<1x32xf32>
    tpu.vector_store %arg14[%118, %c0_59], %117 {strides = array<i32>} : memref<8x32xf32, #tpu.memory_space<vmem>>, vector<1x32xf32>,
    %c2_i32 = arith.constant 2 : i32
    %120 = arith.index_cast %c2_i32 : i32 to index
    %c0_60 = arith.constant 0 : index
    %121 = vector.load %arg13[%120, %c0_60] : memref<8x128xf32, #tpu.memory_space<vmem>>, vector<1x128xf32>
    %cst_61 = arith.constant dense<0.000000e+00> : vector<1x128xf32>
    %122 = tpu.matmul %117, %50, %cst_61 {dimension_numbers = #tpu.dot_dimension_numbers<[1], [0], [0], [1], [0, 0, 1, 1], [], []>} : vector<1x32xf32>, vector<32x128xf32>, vector<1x128xf32> -> vector<1x128xf32>
    %123 = arith.addf %121, %122 : vector<1x128xf32>
    %124 = arith.mulf %123, %59 : vector<1x128xf32>
    %125 = math.tanh %124 : vector<1x128xf32>
    %126 = vector.extract_strided_slice %125 {offsets = [0, 0], sizes = [1, 32], strides = [1, 1]} : vector<1x128xf32> to vector<1x32xf32>
    %cst_62 = arith.constant 1.000000e+00 : f32
    %127 = vector.broadcast %cst_62 : f32 to vector<1x32xf32>
    %128 = arith.addf %126, %127 : vector<1x32xf32>
    %cst_63 = arith.constant 5.000000e-01 : f32
    %129 = vector.broadcast %cst_63 : f32 to vector<1x32xf32>
    %130 = arith.mulf %129, %128 : vector<1x32xf32>
    %131 = vector.extract_strided_slice %125 {offsets = [0, 32], sizes = [1, 32], strides = [1, 1]} : vector<1x128xf32> to vector<1x32xf32>
    %cst_64 = arith.constant 1.000000e+00 : f32
    %132 = vector.broadcast %cst_64 : f32 to vector<1x32xf32>
    %133 = arith.addf %131, %132 : vector<1x32xf32>
    %cst_65 = arith.constant 5.000000e-01 : f32
    %134 = vector.broadcast %cst_65 : f32 to vector<1x32xf32>
    %135 = arith.mulf %134, %133 : vector<1x32xf32>
    %136 = vector.extract_strided_slice %125 {offsets = [0, 64], sizes = [1, 32], strides = [1, 1]} : vector<1x128xf32> to vector<1x32xf32>
    %137 = vector.extract_strided_slice %125 {offsets = [0, 96], sizes = [1, 32], strides = [1, 1]} : vector<1x128xf32> to vector<1x32xf32>
    %cst_66 = arith.constant 1.000000e+00 : f32
    %138 = vector.broadcast %cst_66 : f32 to vector<1x32xf32>
    %139 = arith.addf %137, %138 : vector<1x32xf32>
    %cst_67 = arith.constant 5.000000e-01 : f32
    %140 = vector.broadcast %cst_67 : f32 to vector<1x32xf32>
    %141 = arith.mulf %140, %139 : vector<1x32xf32>
    %142 = arith.mulf %135, %115 : vector<1x32xf32>
    %143 = arith.mulf %130, %136 : vector<1x32xf32>
    %144 = arith.addf %142, %143 : vector<1x32xf32>
    %145 = math.tanh %144 : vector<1x32xf32>
    %146 = arith.mulf %141, %145 : vector<1x32xf32>
    %147 = arith.index_cast %c2_i32 : i32 to index
    %c0_68 = arith.constant 0 : index
    %148 = vector.load %arg14[%147, %c0_68] : memref<8x32xf32, #tpu.memory_space<vmem>>, vector<1x32xf32>
    tpu.vector_store %arg14[%147, %c0_68], %146 {strides = array<i32>} : memref<8x32xf32, #tpu.memory_space<vmem>>, vector<1x32xf32>,
    %c3_i32 = arith.constant 3 : i32
    %149 = arith.index_cast %c3_i32 : i32 to index
    %c0_69 = arith.constant 0 : index
    %150 = vector.load %arg13[%149, %c0_69] : memref<8x128xf32, #tpu.memory_space<vmem>>, vector<1x128xf32>
    %cst_70 = arith.constant dense<0.000000e+00> : vector<1x128xf32>
    %151 = tpu.matmul %146, %50, %cst_70 {dimension_numbers = #tpu.dot_dimension_numbers<[1], [0], [0], [1], [0, 0, 1, 1], [], []>} : vector<1x32xf32>, vector<32x128xf32>, vector<1x128xf32> -> vector<1x128xf32>
    %152 = arith.addf %150, %151 : vector<1x128xf32>
    %153 = arith.mulf %152, %59 : vector<1x128xf32>
    %154 = math.tanh %153 : vector<1x128xf32>
    %155 = vector.extract_strided_slice %154 {offsets = [0, 0], sizes = [1, 32], strides = [1, 1]} : vector<1x128xf32> to vector<1x32xf32>
    %cst_71 = arith.constant 1.000000e+00 : f32
    %156 = vector.broadcast %cst_71 : f32 to vector<1x32xf32>
    %157 = arith.addf %155, %156 : vector<1x32xf32>
    %cst_72 = arith.constant 5.000000e-01 : f32
    %158 = vector.broadcast %cst_72 : f32 to vector<1x32xf32>
    %159 = arith.mulf %158, %157 : vector<1x32xf32>
    %160 = vector.extract_strided_slice %154 {offsets = [0, 32], sizes = [1, 32], strides = [1, 1]} : vector<1x128xf32> to vector<1x32xf32>
    %cst_73 = arith.constant 1.000000e+00 : f32
    %161 = vector.broadcast %cst_73 : f32 to vector<1x32xf32>
    %162 = arith.addf %160, %161 : vector<1x32xf32>
    %cst_74 = arith.constant 5.000000e-01 : f32
    %163 = vector.broadcast %cst_74 : f32 to vector<1x32xf32>
    %164 = arith.mulf %163, %162 : vector<1x32xf32>
    %165 = vector.extract_strided_slice %154 {offsets = [0, 64], sizes = [1, 32], strides = [1, 1]} : vector<1x128xf32> to vector<1x32xf32>
    %166 = vector.extract_strided_slice %154 {offsets = [0, 96], sizes = [1, 32], strides = [1, 1]} : vector<1x128xf32> to vector<1x32xf32>
    %cst_75 = arith.constant 1.000000e+00 : f32
    %167 = vector.broadcast %cst_75 : f32 to vector<1x32xf32>
    %168 = arith.addf %166, %167 : vector<1x32xf32>
    %cst_76 = arith.constant 5.000000e-01 : f32
    %169 = vector.broadcast %cst_76 : f32 to vector<1x32xf32>
    %170 = arith.mulf %169, %168 : vector<1x32xf32>
    %171 = arith.mulf %164, %144 : vector<1x32xf32>
    %172 = arith.mulf %159, %165 : vector<1x32xf32>
    %173 = arith.addf %171, %172 : vector<1x32xf32>
    %174 = math.tanh %173 : vector<1x32xf32>
    %175 = arith.mulf %170, %174 : vector<1x32xf32>
    %176 = arith.index_cast %c3_i32 : i32 to index
    %c0_77 = arith.constant 0 : index
    %177 = vector.load %arg14[%176, %c0_77] : memref<8x32xf32, #tpu.memory_space<vmem>>, vector<1x32xf32>
    tpu.vector_store %arg14[%176, %c0_77], %175 {strides = array<i32>} : memref<8x32xf32, #tpu.memory_space<vmem>>, vector<1x32xf32>,
    %c4_i32 = arith.constant 4 : i32
    %178 = arith.index_cast %c4_i32 : i32 to index
    %c0_78 = arith.constant 0 : index
    %179 = vector.load %arg13[%178, %c0_78] : memref<8x128xf32, #tpu.memory_space<vmem>>, vector<1x128xf32>
    %cst_79 = arith.constant dense<0.000000e+00> : vector<1x128xf32>
    %180 = tpu.matmul %175, %50, %cst_79 {dimension_numbers = #tpu.dot_dimension_numbers<[1], [0], [0], [1], [0, 0, 1, 1], [], []>} : vector<1x32xf32>, vector<32x128xf32>, vector<1x128xf32> -> vector<1x128xf32>
    %181 = arith.addf %179, %180 : vector<1x128xf32>
    %182 = arith.mulf %181, %59 : vector<1x128xf32>
    %183 = math.tanh %182 : vector<1x128xf32>
    %184 = vector.extract_strided_slice %183 {offsets = [0, 0], sizes = [1, 32], strides = [1, 1]} : vector<1x128xf32> to vector<1x32xf32>
    %cst_80 = arith.constant 1.000000e+00 : f32
    %185 = vector.broadcast %cst_80 : f32 to vector<1x32xf32>
    %186 = arith.addf %184, %185 : vector<1x32xf32>
    %cst_81 = arith.constant 5.000000e-01 : f32
    %187 = vector.broadcast %cst_81 : f32 to vector<1x32xf32>
    %188 = arith.mulf %187, %186 : vector<1x32xf32>
    %189 = vector.extract_strided_slice %183 {offsets = [0, 32], sizes = [1, 32], strides = [1, 1]} : vector<1x128xf32> to vector<1x32xf32>
    %cst_82 = arith.constant 1.000000e+00 : f32
    %190 = vector.broadcast %cst_82 : f32 to vector<1x32xf32>
    %191 = arith.addf %189, %190 : vector<1x32xf32>
    %cst_83 = arith.constant 5.000000e-01 : f32
    %192 = vector.broadcast %cst_83 : f32 to vector<1x32xf32>
    %193 = arith.mulf %192, %191 : vector<1x32xf32>
    %194 = vector.extract_strided_slice %183 {offsets = [0, 64], sizes = [1, 32], strides = [1, 1]} : vector<1x128xf32> to vector<1x32xf32>
    %195 = vector.extract_strided_slice %183 {offsets = [0, 96], sizes = [1, 32], strides = [1, 1]} : vector<1x128xf32> to vector<1x32xf32>
    %cst_84 = arith.constant 1.000000e+00 : f32
    %196 = vector.broadcast %cst_84 : f32 to vector<1x32xf32>
    %197 = arith.addf %195, %196 : vector<1x32xf32>
    %cst_85 = arith.constant 5.000000e-01 : f32
    %198 = vector.broadcast %cst_85 : f32 to vector<1x32xf32>
    %199 = arith.mulf %198, %197 : vector<1x32xf32>
    %200 = arith.mulf %193, %173 : vector<1x32xf32>
    %201 = arith.mulf %188, %194 : vector<1x32xf32>
    %202 = arith.addf %200, %201 : vector<1x32xf32>
    %203 = math.tanh %202 : vector<1x32xf32>
    %204 = arith.mulf %199, %203 : vector<1x32xf32>
    %205 = arith.index_cast %c4_i32 : i32 to index
    %c0_86 = arith.constant 0 : index
    %206 = vector.load %arg14[%205, %c0_86] : memref<8x32xf32, #tpu.memory_space<vmem>>, vector<1x32xf32>
    tpu.vector_store %arg14[%205, %c0_86], %204 {strides = array<i32>} : memref<8x32xf32, #tpu.memory_space<vmem>>, vector<1x32xf32>,
    %c5_i32 = arith.constant 5 : i32
    %207 = arith.index_cast %c5_i32 : i32 to index
    %c0_87 = arith.constant 0 : index
    %208 = vector.load %arg13[%207, %c0_87] : memref<8x128xf32, #tpu.memory_space<vmem>>, vector<1x128xf32>
    %cst_88 = arith.constant dense<0.000000e+00> : vector<1x128xf32>
    %209 = tpu.matmul %204, %50, %cst_88 {dimension_numbers = #tpu.dot_dimension_numbers<[1], [0], [0], [1], [0, 0, 1, 1], [], []>} : vector<1x32xf32>, vector<32x128xf32>, vector<1x128xf32> -> vector<1x128xf32>
    %210 = arith.addf %208, %209 : vector<1x128xf32>
    %211 = arith.mulf %210, %59 : vector<1x128xf32>
    %212 = math.tanh %211 : vector<1x128xf32>
    %213 = vector.extract_strided_slice %212 {offsets = [0, 0], sizes = [1, 32], strides = [1, 1]} : vector<1x128xf32> to vector<1x32xf32>
    %cst_89 = arith.constant 1.000000e+00 : f32
    %214 = vector.broadcast %cst_89 : f32 to vector<1x32xf32>
    %215 = arith.addf %213, %214 : vector<1x32xf32>
    %cst_90 = arith.constant 5.000000e-01 : f32
    %216 = vector.broadcast %cst_90 : f32 to vector<1x32xf32>
    %217 = arith.mulf %216, %215 : vector<1x32xf32>
    %218 = vector.extract_strided_slice %212 {offsets = [0, 32], sizes = [1, 32], strides = [1, 1]} : vector<1x128xf32> to vector<1x32xf32>
    %cst_91 = arith.constant 1.000000e+00 : f32
    %219 = vector.broadcast %cst_91 : f32 to vector<1x32xf32>
    %220 = arith.addf %218, %219 : vector<1x32xf32>
    %cst_92 = arith.constant 5.000000e-01 : f32
    %221 = vector.broadcast %cst_92 : f32 to vector<1x32xf32>
    %222 = arith.mulf %221, %220 : vector<1x32xf32>
    %223 = vector.extract_strided_slice %212 {offsets = [0, 64], sizes = [1, 32], strides = [1, 1]} : vector<1x128xf32> to vector<1x32xf32>
    %224 = vector.extract_strided_slice %212 {offsets = [0, 96], sizes = [1, 32], strides = [1, 1]} : vector<1x128xf32> to vector<1x32xf32>
    %cst_93 = arith.constant 1.000000e+00 : f32
    %225 = vector.broadcast %cst_93 : f32 to vector<1x32xf32>
    %226 = arith.addf %224, %225 : vector<1x32xf32>
    %cst_94 = arith.constant 5.000000e-01 : f32
    %227 = vector.broadcast %cst_94 : f32 to vector<1x32xf32>
    %228 = arith.mulf %227, %226 : vector<1x32xf32>
    %229 = arith.mulf %222, %202 : vector<1x32xf32>
    %230 = arith.mulf %217, %223 : vector<1x32xf32>
    %231 = arith.addf %229, %230 : vector<1x32xf32>
    %232 = math.tanh %231 : vector<1x32xf32>
    %233 = arith.mulf %228, %232 : vector<1x32xf32>
    %234 = arith.index_cast %c5_i32 : i32 to index
    %c0_95 = arith.constant 0 : index
    %235 = vector.load %arg14[%234, %c0_95] : memref<8x32xf32, #tpu.memory_space<vmem>>, vector<1x32xf32>
    tpu.vector_store %arg14[%234, %c0_95], %233 {strides = array<i32>} : memref<8x32xf32, #tpu.memory_space<vmem>>, vector<1x32xf32>,
    %c6_i32 = arith.constant 6 : i32
    %236 = arith.index_cast %c6_i32 : i32 to index
    %c0_96 = arith.constant 0 : index
    %237 = vector.load %arg13[%236, %c0_96] : memref<8x128xf32, #tpu.memory_space<vmem>>, vector<1x128xf32>
    %cst_97 = arith.constant dense<0.000000e+00> : vector<1x128xf32>
    %238 = tpu.matmul %233, %50, %cst_97 {dimension_numbers = #tpu.dot_dimension_numbers<[1], [0], [0], [1], [0, 0, 1, 1], [], []>} : vector<1x32xf32>, vector<32x128xf32>, vector<1x128xf32> -> vector<1x128xf32>
    %239 = arith.addf %237, %238 : vector<1x128xf32>
    %240 = arith.mulf %239, %59 : vector<1x128xf32>
    %241 = math.tanh %240 : vector<1x128xf32>
    %242 = vector.extract_strided_slice %241 {offsets = [0, 0], sizes = [1, 32], strides = [1, 1]} : vector<1x128xf32> to vector<1x32xf32>
    %cst_98 = arith.constant 1.000000e+00 : f32
    %243 = vector.broadcast %cst_98 : f32 to vector<1x32xf32>
    %244 = arith.addf %242, %243 : vector<1x32xf32>
    %cst_99 = arith.constant 5.000000e-01 : f32
    %245 = vector.broadcast %cst_99 : f32 to vector<1x32xf32>
    %246 = arith.mulf %245, %244 : vector<1x32xf32>
    %247 = vector.extract_strided_slice %241 {offsets = [0, 32], sizes = [1, 32], strides = [1, 1]} : vector<1x128xf32> to vector<1x32xf32>
    %cst_100 = arith.constant 1.000000e+00 : f32
    %248 = vector.broadcast %cst_100 : f32 to vector<1x32xf32>
    %249 = arith.addf %247, %248 : vector<1x32xf32>
    %cst_101 = arith.constant 5.000000e-01 : f32
    %250 = vector.broadcast %cst_101 : f32 to vector<1x32xf32>
    %251 = arith.mulf %250, %249 : vector<1x32xf32>
    %252 = vector.extract_strided_slice %241 {offsets = [0, 64], sizes = [1, 32], strides = [1, 1]} : vector<1x128xf32> to vector<1x32xf32>
    %253 = vector.extract_strided_slice %241 {offsets = [0, 96], sizes = [1, 32], strides = [1, 1]} : vector<1x128xf32> to vector<1x32xf32>
    %cst_102 = arith.constant 1.000000e+00 : f32
    %254 = vector.broadcast %cst_102 : f32 to vector<1x32xf32>
    %255 = arith.addf %253, %254 : vector<1x32xf32>
    %cst_103 = arith.constant 5.000000e-01 : f32
    %256 = vector.broadcast %cst_103 : f32 to vector<1x32xf32>
    %257 = arith.mulf %256, %255 : vector<1x32xf32>
    %258 = arith.mulf %251, %231 : vector<1x32xf32>
    %259 = arith.mulf %246, %252 : vector<1x32xf32>
    %260 = arith.addf %258, %259 : vector<1x32xf32>
    %261 = math.tanh %260 : vector<1x32xf32>
    %262 = arith.mulf %257, %261 : vector<1x32xf32>
    %263 = arith.index_cast %c6_i32 : i32 to index
    %c0_104 = arith.constant 0 : index
    %264 = vector.load %arg14[%263, %c0_104] : memref<8x32xf32, #tpu.memory_space<vmem>>, vector<1x32xf32>
    tpu.vector_store %arg14[%263, %c0_104], %262 {strides = array<i32>} : memref<8x32xf32, #tpu.memory_space<vmem>>, vector<1x32xf32>,
    %c7_i32 = arith.constant 7 : i32
    %265 = arith.index_cast %c7_i32 : i32 to index
    %c0_105 = arith.constant 0 : index
    %266 = vector.load %arg13[%265, %c0_105] : memref<8x128xf32, #tpu.memory_space<vmem>>, vector<1x128xf32>
    %cst_106 = arith.constant dense<0.000000e+00> : vector<1x128xf32>
    %267 = tpu.matmul %262, %50, %cst_106 {dimension_numbers = #tpu.dot_dimension_numbers<[1], [0], [0], [1], [0, 0, 1, 1], [], []>} : vector<1x32xf32>, vector<32x128xf32>, vector<1x128xf32> -> vector<1x128xf32>
    %268 = arith.addf %266, %267 : vector<1x128xf32>
    %269 = arith.mulf %268, %59 : vector<1x128xf32>
    %270 = math.tanh %269 : vector<1x128xf32>
    %271 = vector.extract_strided_slice %270 {offsets = [0, 0], sizes = [1, 32], strides = [1, 1]} : vector<1x128xf32> to vector<1x32xf32>
    %cst_107 = arith.constant 1.000000e+00 : f32
    %272 = vector.broadcast %cst_107 : f32 to vector<1x32xf32>
    %273 = arith.addf %271, %272 : vector<1x32xf32>
    %cst_108 = arith.constant 5.000000e-01 : f32
    %274 = vector.broadcast %cst_108 : f32 to vector<1x32xf32>
    %275 = arith.mulf %274, %273 : vector<1x32xf32>
    %276 = vector.extract_strided_slice %270 {offsets = [0, 32], sizes = [1, 32], strides = [1, 1]} : vector<1x128xf32> to vector<1x32xf32>
    %cst_109 = arith.constant 1.000000e+00 : f32
    %277 = vector.broadcast %cst_109 : f32 to vector<1x32xf32>
    %278 = arith.addf %276, %277 : vector<1x32xf32>
    %cst_110 = arith.constant 5.000000e-01 : f32
    %279 = vector.broadcast %cst_110 : f32 to vector<1x32xf32>
    %280 = arith.mulf %279, %278 : vector<1x32xf32>
    %281 = vector.extract_strided_slice %270 {offsets = [0, 64], sizes = [1, 32], strides = [1, 1]} : vector<1x128xf32> to vector<1x32xf32>
    %282 = vector.extract_strided_slice %270 {offsets = [0, 96], sizes = [1, 32], strides = [1, 1]} : vector<1x128xf32> to vector<1x32xf32>
    %cst_111 = arith.constant 1.000000e+00 : f32
    %283 = vector.broadcast %cst_111 : f32 to vector<1x32xf32>
    %284 = arith.addf %282, %283 : vector<1x32xf32>
    %cst_112 = arith.constant 5.000000e-01 : f32
    %285 = vector.broadcast %cst_112 : f32 to vector<1x32xf32>
    %286 = arith.mulf %285, %284 : vector<1x32xf32>
    %287 = arith.mulf %280, %260 : vector<1x32xf32>
    %288 = arith.mulf %275, %281 : vector<1x32xf32>
    %289 = arith.addf %287, %288 : vector<1x32xf32>
    %290 = math.tanh %289 : vector<1x32xf32>
    %291 = arith.mulf %286, %290 : vector<1x32xf32>
    %292 = arith.index_cast %c7_i32 : i32 to index
    %c0_113 = arith.constant 0 : index
    %293 = vector.load %arg14[%292, %c0_113] : memref<8x32xf32, #tpu.memory_space<vmem>>, vector<1x32xf32>
    tpu.vector_store %arg14[%292, %c0_113], %291 {strides = array<i32>} : memref<8x32xf32, #tpu.memory_space<vmem>>, vector<1x32xf32>,
    %c8_i32 = arith.constant 8 : i32
    %294 = tpu.concatenate %291, %289 in 0 : vector<1x32xf32>, vector<1x32xf32> -> vector<2x32xf32>
    %c0_114 = arith.constant 0 : index
    %c0_115 = arith.constant 0 : index
    %295 = vector.load %arg11[%c0_114, %c0_115] : memref<2x32xf32, #tpu.memory_space<vmem>>, vector<2x32xf32>
    tpu.vector_store %arg11[%c0_114, %c0_115], %294 {strides = array<i32>} : memref<2x32xf32, #tpu.memory_space<vmem>>, vector<2x32xf32>,
    %c1_116 = arith.constant 1 : index
    %c0_117 = arith.constant 0 : index
    %296 = vector.load %arg8[%c1_116, %c0_117] : memref<2x128xf32, #tpu.memory_space<vmem>>, vector<1x128xf32>
    %c0_118 = arith.constant 0 : index
    %c0_119 = arith.constant 0 : index
    %297 = vector.load %arg14[%c0_118, %c0_119] : memref<8x32xf32, #tpu.memory_space<vmem>>, vector<8x32xf32>
    %c0_120 = arith.constant 0 : index
    %c0_121 = arith.constant 0 : index
    %298 = vector.load %arg9[%c0_120, %c0_121] : memref<32x128xf32, #tpu.memory_space<vmem>>, vector<32x128xf32>
    %cst_122 = arith.constant dense<0.000000e+00> : vector<8x128xf32>
    %299 = tpu.matmul %297, %298, %cst_122 {dimension_numbers = #tpu.dot_dimension_numbers<[1], [0], [0], [1], [0, 0, 1, 1], [], []>} : vector<8x32xf32>, vector<32x128xf32>, vector<8x128xf32> -> vector<8x128xf32>
    %300 = vector.broadcast %296 : vector<1x128xf32> to vector<8x128xf32>
    %301 = arith.addf %299, %300 : vector<8x128xf32>
    %cst_123 = arith.constant dense<0xFF800000> : vector<8xf32>
    %302 = vector.multi_reduction <maximumf>, %301, %cst_123 [1] : vector<8x128xf32> to vector<8xf32>
    %303 = vector.shape_cast %302 : vector<8xf32> to vector<8x1xf32>
    %304 = vector.broadcast %303 : vector<8x1xf32> to vector<8x128xf32>
    %305 = arith.subf %301, %304 : vector<8x128xf32>
    %306 = math.exp %305 : vector<8x128xf32>
    %cst_124 = arith.constant dense<0.000000e+00> : vector<8xf32>
    %307 = vector.multi_reduction <add>, %306, %cst_124 [1] : vector<8x128xf32> to vector<8xf32>
    %308 = vector.shape_cast %307 : vector<8xf32> to vector<8x1xf32>
    %309 = math.log %308 : vector<8x1xf32>
    %310 = arith.addf %303, %309 : vector<8x1xf32>
    %311 = vector.broadcast %310 : vector<8x1xf32> to vector<8x128xf32>
    %312 = arith.subf %301, %311 : vector<8x128xf32>
    %c0_125 = arith.constant 0 : index
    %c0_126 = arith.constant 0 : index
    %313 = vector.load %arg10[%c0_125, %c0_126] : memref<8x128xf32, #tpu.memory_space<vmem>>, vector<8x128xf32>
    tpu.vector_store %arg10[%c0_125, %c0_126], %312 {strides = array<i32>} : memref<8x128xf32, #tpu.memory_space<vmem>>, vector<8x128xf32>,
    return
  }
  func.func @transform_0(%arg0: i32, %arg1: memref<8xi32, #tpu.memory_space<smem>>, %arg2: memref<1xi32, #tpu.memory_space<smem>>) -> (i32, i32) {
    %c0_i32 = arith.constant 0 : i32
    %c0_i32_0 = arith.constant 0 : i32
    %c0_i32_1 = arith.constant 0 : i32
    return %c0_i32, %c0_i32_0 : i32, i32
  }
  func.func @transform_1(%arg0: i32, %arg1: memref<8xi32, #tpu.memory_space<smem>>, %arg2: memref<1xi32, #tpu.memory_space<smem>>) -> (i32, i32) {
    %c0_i32 = arith.constant 0 : i32
    %c0_i32_0 = arith.constant 0 : i32
    %c0_i32_1 = arith.constant 0 : i32
    return %c0_i32, %c0_i32_0 : i32, i32
  }
  func.func @transform_2(%arg0: i32, %arg1: memref<8xi32, #tpu.memory_space<smem>>, %arg2: memref<1xi32, #tpu.memory_space<smem>>) -> (i32, i32) {
    %c0_i32 = arith.constant 0 : i32
    %c0_i32_0 = arith.constant 0 : i32
    %c0_i32_1 = arith.constant 0 : i32
    return %c0_i32, %c0_i32_0 : i32, i32
  }
  func.func @transform_3(%arg0: i32, %arg1: memref<8xi32, #tpu.memory_space<smem>>, %arg2: memref<1xi32, #tpu.memory_space<smem>>) -> (i32, i32) {
    %c0_i32 = arith.constant 0 : i32
    %c0_i32_0 = arith.constant 0 : i32
    %c0_i32_1 = arith.constant 0 : i32
    return %c0_i32, %c0_i32_0 : i32, i32
  }
  func.func @transform_4(%arg0: i32, %arg1: memref<8xi32, #tpu.memory_space<smem>>, %arg2: memref<1xi32, #tpu.memory_space<smem>>) -> (i32, i32) {
    %c0_i32 = arith.constant 0 : i32
    %c0_i32_0 = arith.constant 0 : i32
    %c0_i32_1 = arith.constant 0 : i32
    return %c0_i32, %c0_i32_0 : i32, i32
  }
  func.func @transform_5(%arg0: i32, %arg1: memref<8xi32, #tpu.memory_space<smem>>, %arg2: memref<1xi32, #tpu.memory_space<smem>>) -> (i32, i32) {
    %c0_i32 = arith.constant 0 : i32
    %c0_i32_0 = arith.constant 0 : i32
    %c0_i32_1 = arith.constant 0 : i32
    return %c0_i32, %c0_i32_0 : i32, i32
  }
  func.func @transform_6(%arg0: i32, %arg1: memref<8xi32, #tpu.memory_space<smem>>, %arg2: memref<1xi32, #tpu.memory_space<smem>>) -> (i32, i32) {
    %c0_i32 = arith.constant 0 : i32
    %c0_i32_0 = arith.constant 0 : i32
    %c0_i32_1 = arith.constant 0 : i32
    return %c0_i32, %c0_i32_0 : i32, i32
  }
  func.func @transform_7(%arg0: i32, %arg1: memref<8xi32, #tpu.memory_space<smem>>, %arg2: memref<1xi32, #tpu.memory_space<smem>>) -> (i32, i32) {
    %c0_i32 = arith.constant 0 : i32
    %c0_i32_0 = arith.constant 0 : i32
    %c0_i32_1 = arith.constant 0 : i32
    return %c0_i32, %c0_i32_0 : i32, i32
  }
  func.func @transform_8(%arg0: i32, %arg1: memref<8xi32, #tpu.memory_space<smem>>, %arg2: memref<1xi32, #tpu.memory_space<smem>>) -> (i32, i32) {
    %c0_i32 = arith.constant 0 : i32
    %c0_i32_0 = arith.constant 0 : i32
    %c0_i32_1 = arith.constant 0 : i32
    return %c0_i32, %c0_i32_0 : i32, i32
  }
}

</mosaic_0001>

<llo_original>
// kernel: tpu_custom_call.1
$region0: #{tpu_custom_call.1}
  #allocation0 [shape = 'u32[]', space=smem, size = 0x4, offset = 0x4, fixed_abs, tag = 'smem constant byte address 0x4 - core index']
  #allocation1 [shape = 'u32[144,128]{1,0:T(1,128)}', space=vmem, size = 0x12000, scoped, tag = 'internal scratch']
  #allocation2 [shape = 'f32[8,128]{1,0:T(8,128)}', space=vmem, size = 0x1000, scoped, tag = 'scratch operand']
  #allocation3 [shape = 'f32[8,128]{1,0:T(8,128)}', space=vmem, size = 0x1000, scoped, tag = 'scratch operand']
  #allocation4 [shape = 'f32[8,32]{1,0:T(8,128)}', space=vmem, size = 0x1000, scoped, tag = 'scratch operand']
  #allocation5 [shape = 's32[1]{0}', space=sflag, size = 0x4, scoped, tag = 'scoped memory for tpu_custom_call.1']
  #allocation6 [shape = 'u8[512]{0}', space=smem, size = 0x200, scoped, tag = 'prefetched SMEM operand 0']
  #allocation7 [shape = 's32[1]{0:T(128)S(6)}', space=smem, size = 0x200, scoped, tag = 'prefetched SMEM operand 1']
  %s0 = inlined_call_operand.vmem [shape: s32[8], index: 0, kind: input, shape index: {}]
  %s1 = inlined_call_operand.<no memory space> [shape: s32[1], index: 1, kind: input, shape index: {}]
  %s2 = inlined_call_operand.hbm [shape: f32[30,128], index: 2, kind: input, shape index: {}]
  %s3 = inlined_call_operand.vmem [shape: f32[5,128], index: 3, kind: input, shape index: {}]
  %s4 = inlined_call_operand.vmem [shape: f32[2,32], index: 4, kind: input, shape index: {}]
  %s5 = inlined_call_operand.hbm [shape: f32[128,128], index: 5, kind: input, shape index: {}]
  %s6 = inlined_call_operand.hbm [shape: f32[32,128], index: 6, kind: input, shape index: {}]
  %s7 = inlined_call_operand.vmem [shape: f32[2,128], index: 7, kind: input, shape index: {}]
  %s8 = inlined_call_operand.hbm [shape: f32[32,128], index: 8, kind: input, shape index: {}]
  %s9 = inlined_call_operand.hbm [shape: f32[8,128], index: 9, kind: output, shape index: {0}]
  %s10 = inlined_call_operand.hbm [shape: f32[2,32], index: 10, kind: output, shape index: {1}]
  %11 = xla_tuple %s9, %s10
  %s12 = sld [smem:[#allocation0]]
  $region62: #{tpu_custom_call.1} parent=0
    _
  %s14 = ssub.s32 1, %s12
  %s15 = scalar_select 0, %s14, %s12
  %s16 = sshll.u32 %s0, 4
  %s17 = int_to_ptr.vmem [resolvable:$true] %s16
  %19 = dma.vmem_to_smem %s17, 16, [#allocation6], [#allocation5]
  %20 = sst [smem:[#allocation7]] %s1
  %21 = dma.done [#allocation5], 16
  %22 = sfence
  $region1: #{tpu_custom_call.1} parent=0
    #allocation8 [shape = 'u8[16384]{0}', space=vmem, size = 0x4000, scoped, tag = 'input window, operand 2, single buffered']
    #allocation9 [shape = 's32[1]{0}', space=sflag, size = 0x4, scoped, tag = 'scoped memory for tpu_custom_call.1']
    #allocation10 [shape = 's32[1]{0}', space=sflag, size = 0x4, scoped, tag = 'scoped memory for tpu_custom_call.1']
    #allocation11 [shape = 'u8[65536]{0}', space=vmem, size = 0x10000, scoped, tag = 'input window, operand 5, single buffered']
    #allocation12 [shape = 's32[1]{0}', space=sflag, size = 0x4, scoped, tag = 'scoped memory for tpu_custom_call.1']
    #allocation13 [shape = 'u8[16384]{0}', space=vmem, size = 0x4000, scoped, tag = 'input window, operand 6, single buffered']
    #allocation14 [shape = 'u8[16384]{0}', space=vmem, size = 0x4000, scoped, tag = 'input window, operand 8, single buffered']
    #allocation15 [shape = 's32[1]{0}', space=sflag, size = 0x4, scoped, tag = 'scoped memory for tpu_custom_call.1']
    #allocation16 [shape = 'u8[4096]{0}', space=vmem, size = 0x1000, scoped, tag = 'output window, operand 0, single buffered']
    #allocation17 [shape = 'u8[1024]{0}', space=vmem, size = 0x400, scoped, tag = 'output window, operand 1, single buffered']
    #allocation18 [shape = 's32[1]{0}', space=sflag, size = 0x4, scoped, tag = 'scoped memory for tpu_custom_call.1']
    %23 = vsyncpa [#allocation9], 0
    %24 = vsyncpa [#allocation12], 0
    %25 = vsyncpa [#allocation15], 0
    %26 = vsyncpa [#allocation10], 0
    %27 = vsyncpa [#allocation18], 0
    // Predicated region
    $region2: #{tpu_custom_call.1} parent=1 // pred_check
      _
    $region3: #{tpu_custom_call.1} parent=1 // pred_check_branch
      %29 = sbr.rel (0) target = $region5
    $region4: #{tpu_custom_call.1} parent=1 // pred_region
      %s31 = ssub.s32 512, 512
      %32 = vsyncadd [#allocation9], %s31
      %s33 = sshll.u32 [#allocation8], 4
      %s34 = int_to_ptr.vmem [resolvable:$true] %s33
      %39 = dma.hbm_to_vmem [thread:$0]  %s2, 512, %s34, [#allocation9], 128, 128, 8
    $region5: #{tpu_custom_call.1} parent=1 // pred_fallthru
      _
    // Predicated region
    $region6: #{tpu_custom_call.1} parent=1 // pred_check
      _
    $region7: #{tpu_custom_call.1} parent=1 // pred_check_branch
      %41 = sbr.rel (0) target = $region9
    $region8: #{tpu_custom_call.1} parent=1 // pred_region
      _
    $region9: #{tpu_custom_call.1} parent=1 // pred_fallthru
      _
    // Predicated region
    $region10: #{tpu_custom_call.1} parent=1 // pred_check
      _
    $region11: #{tpu_custom_call.1} parent=1 // pred_check_branch
      %43 = sbr.rel (0) target = $region13
    $region12: #{tpu_custom_call.1} parent=1 // pred_region
      _
    $region13: #{tpu_custom_call.1} parent=1 // pred_fallthru
      _
    // Predicated region
    $region14: #{tpu_custom_call.1} parent=1 // pred_check
      _
    $region15: #{tpu_custom_call.1} parent=1 // pred_check_branch
      %45 = sbr.rel (0) target = $region17
    $region16: #{tpu_custom_call.1} parent=1 // pred_region
      %s47 = ssub.s32 2048, 2048
      %48 = vsyncadd [#allocation12], %s47
      %s49 = sshll.u32 [#allocation11], 4
      %s50 = int_to_ptr.vmem [resolvable:$true] %s49
      %55 = dma.hbm_to_vmem [thread:$0]  %s5, 2048, %s50, [#allocation12], 128, 128, 8
    $region17: #{tpu_custom_call.1} parent=1 // pred_fallthru
      _
    // Predicated region
    $region18: #{tpu_custom_call.1} parent=1 // pred_check
      _
    $region19: #{tpu_custom_call.1} parent=1 // pred_check_branch
      %57 = sbr.rel (0) target = $region21
    $region20: #{tpu_custom_call.1} parent=1 // pred_region
      %s59 = ssub.s32 512, 512
      %60 = vsyncadd [#allocation12], %s59
      %s61 = sshll.u32 [#allocation13], 4
      %s62 = int_to_ptr.vmem [resolvable:$true] %s61
      %67 = dma.hbm_to_vmem [thread:$0]  %s6, 512, %s62, [#allocation12], 128, 128, 8
    $region21: #{tpu_custom_call.1} parent=1 // pred_fallthru
      _
    // Predicated region
    $region22: #{tpu_custom_call.1} parent=1 // pred_check
      _
    $region23: #{tpu_custom_call.1} parent=1 // pred_check_branch
      %69 = sbr.rel (0) target = $region25
    $region24: #{tpu_custom_call.1} parent=1 // pred_region
      _
    $region25: #{tpu_custom_call.1} parent=1 // pred_fallthru
      _
    // Predicated region
    $region26: #{tpu_custom_call.1} parent=1 // pred_check
      _
    $region27: #{tpu_custom_call.1} parent=1 // pred_check_branch
      %71 = sbr.rel (0) target = $region29
    $region28: #{tpu_custom_call.1} parent=1 // pred_region
      %s73 = ssub.s32 512, 512
      %74 = vsyncadd [#allocation15], %s73
      %s75 = sshll.u32 [#allocation14], 4
      %s76 = int_to_ptr.vmem [resolvable:$true] %s75
      %81 = dma.hbm_to_vmem [thread:$0]  %s8, 512, %s76, [#allocation15], 128, 128, 8
    $region29: #{tpu_custom_call.1} parent=1 // pred_fallthru
      _
    // Predicated region
    $region30: #{tpu_custom_call.1} parent=1 // pred_check
      _
    $region31: #{tpu_custom_call.1} parent=1 // pred_check_branch
      %83 = sbr.rel (0) target = $region33
    $region32: #{tpu_custom_call.1} parent=1 // pred_region
      %84 = dma.done [#allocation9], 512
    $region33: #{tpu_custom_call.1} parent=1 // pred_fallthru
      _
    // Predicated region
    $region34: #{tpu_custom_call.1} parent=1 // pred_check
      _
    $region35: #{tpu_custom_call.1} parent=1 // pred_check_branch
      %86 = sbr.rel (0) target = $region37
    $region36: #{tpu_custom_call.1} parent=1 // pred_region
      %87 = dma.done [#allocation12], 2048
    $region37: #{tpu_custom_call.1} parent=1 // pred_fallthru
      _
    // Predicated region
    $region38: #{tpu_custom_call.1} parent=1 // pred_check
      _
    $region39: #{tpu_custom_call.1} parent=1 // pred_check_branch
      %89 = sbr.rel (0) target = $region41
    $region40: #{tpu_custom_call.1} parent=1 // pred_region
      %90 = dma.done [#allocation12], 512
    $region41: #{tpu_custom_call.1} parent=1 // pred_fallthru
      _
    // Predicated region
    $region42: #{tpu_custom_call.1} parent=1 // pred_check
      _
    $region43: #{tpu_custom_call.1} parent=1 // pred_check_branch
      %92 = sbr.rel (0) target = $region45
    $region44: #{tpu_custom_call.1} parent=1 // pred_region
      %93 = dma.done [#allocation15], 512
    $region45: #{tpu_custom_call.1} parent=1 // pred_fallthru
      _
    %s94 = sld [smem:[#allocation7]]
    %s95 = scalar_lea.vmem %s3, %s94
    %v96 = vld [vmem:[%s95] sm:$0x1]
    %s97 = sld [smem:[#allocation6]]
    %s98 = scalar_lea.vmem [#allocation8], %s97
    %v99 = vld [vmem:[%s98] sm:$0x1]
    %v100 = vadd.f32 %v99, %v96
    %101 = vst [vmem:[#allocation2] sm:$0x1] %v100
    %s102 = sld [smem:[#allocation6 + $0x1]]
    %s103 = scalar_lea.vmem [#allocation8], %s102
    %v104 = vld [vmem:[%s103] sm:$0x1]
    %v105 = vadd.f32 %v104, %v96
    %106 = vst [vmem:[#allocation2 + $0x1] sm:$0x1] %v105
    %s107 = sld [smem:[#allocation6 + $0x2]]
    %s108 = scalar_lea.vmem [#allocation8], %s107
    %v109 = vld [vmem:[%s108] sm:$0x1]
    %v110 = vadd.f32 %v109, %v96
    %111 = vst [vmem:[#allocation2 + $0x2] sm:$0x1] %v110
    %s112 = sld [smem:[#allocation6 + $0x3]]
    %s113 = scalar_lea.vmem [#allocation8], %s112
    %v114 = vld [vmem:[%s113] sm:$0x1]
    %v115 = vadd.f32 %v114, %v96
    %116 = vst [vmem:[#allocation2 + $0x3] sm:$0x1] %v115
    %s117 = sld [smem:[#allocation6 + $0x4]]
    %s118 = scalar_lea.vmem [#allocation8], %s117
    %v119 = vld [vmem:[%s118] sm:$0x1]
    %v120 = vadd.f32 %v119, %v96
    %121 = vst [vmem:[#allocation2 + $0x4] sm:$0x1] %v120
    %s122 = sld [smem:[#allocation6 + $0x5]]
    %s123 = scalar_lea.vmem [#allocation8], %s122
    %v124 = vld [vmem:[%s123] sm:$0x1]
    %v125 = vadd.f32 %v124, %v96
    %126 = vst [vmem:[#allocation2 + $0x5] sm:$0x1] %v125
    %s127 = sld [smem:[#allocation6 + $0x6]]
    %s128 = scalar_lea.vmem [#allocation8], %s127
    %v129 = vld [vmem:[%s128] sm:$0x1]
    %v130 = vadd.f32 %v129, %v96
    %131 = vst [vmem:[#allocation2 + $0x6] sm:$0x1] %v130
    %s132 = sld [smem:[#allocation6 + $0x7]]
    %s133 = scalar_lea.vmem [#allocation8], %s132
    %v134 = vld [vmem:[%s133] sm:$0x1]
    %v135 = vadd.f32 %v134, %v96
    %136 = vst [vmem:[#allocation2 + $0x7] sm:$0x1] %v135
    %v137 = vld [vmem:[%s7] sm:$0x1]
    %v138 = vld [vmem:[#allocation2] sm:$0xff]
    %v139 = vld [vmem:[#allocation11] sm:$0xff]
    %v140 = vld [vmem:[#allocation11 + $0x8] sm:$0xff]
    %v141 = vld [vmem:[#allocation11 + $0x10] sm:$0xff]
    %v142 = vld [vmem:[#allocation11 + $0x18] sm:$0xff]
    %v143 = vld [vmem:[#allocation11 + $0x20] sm:$0xff]
    %v144 = vld [vmem:[#allocation11 + $0x28] sm:$0xff]
    %v145 = vld [vmem:[#allocation11 + $0x30] sm:$0xff]
    %v146 = vld [vmem:[#allocation11 + $0x38] sm:$0xff]
    %v147 = vld [vmem:[#allocation11 + $0x40] sm:$0xff]
    %v148 = vld [vmem:[#allocation11 + $0x48] sm:$0xff]
    %v149 = vld [vmem:[#allocation11 + $0x50] sm:$0xff]
    %v150 = vld [vmem:[#allocation11 + $0x58] sm:$0xff]
    %v151 = vld [vmem:[#allocation11 + $0x60] sm:$0xff]
    %v152 = vld [vmem:[#allocation11 + $0x68] sm:$0xff]
    %v153 = vld [vmem:[#allocation11 + $0x70] sm:$0xff]
    %v154 = vld [vmem:[#allocation11 + $0x78] sm:$0xff]
    %v155 = vlaneseq
    %v156 = vshrl.u32 %v155, 7
    %v157 = vsub.s32 0, %v156
    %v158 = vrot.slane %v137, %v157
    %159 = vmatprep.subr.mxu0 0.0
    %160 = vmatpush1.msra.mxu0 %v139
    %161 = vmatprep.subr.mxu0 0.0
    %162 = vmatpush1.msra.mxu0 %v140
    %163 = vmatprep.subr.mxu0 0.0
    %164 = vmatpush1.msra.mxu0 %v141
    %165 = vmatprep.subr.mxu0 0.0
    %166 = vmatpush1.msra.mxu0 %v142
    %167 = vmatprep.subr.mxu0 0.0
    %168 = vmatpush1.msra.mxu0 %v143
    %169 = vmatprep.subr.mxu0 0.0
    %170 = vmatpush1.msra.mxu0 %v144
    %171 = vmatprep.subr.mxu0 0.0
    %172 = vmatpush1.msra.mxu0 %v145
    %173 = vmatprep.subr.mxu0 0.0
    %174 = vmatpush1.msra.mxu0 %v146
    %175 = vmatprep.subr.mxu0 0.0
    %176 = vmatpush1.msra.mxu0 %v147
    %177 = vmatprep.subr.mxu0 0.0
    %178 = vmatpush1.msra.mxu0 %v148
    %179 = vmatprep.subr.mxu0 0.0
    %180 = vmatpush1.msra.mxu0 %v149
    %181 = vmatprep.subr.mxu0 0.0
    %182 = vmatpush1.msra.mxu0 %v150
    %183 = vmatprep.subr.mxu0 0.0
    %184 = vmatpush1.msra.mxu0 %v151
    %185 = vmatprep.subr.mxu0 0.0
    %186 = vmatpush1.msra.mxu0 %v152
    %187 = vmatprep.subr.mxu0 0.0
    %188 = vmatpush1.msra.mxu0 %v153
    %189 = vmatprep.subr.mxu0 0.0
    %190 = vmatpush1.msra.mxu0 %v154
    %191 = vmatprep.subr.mxu0 0.0
    %192 = vmatpush1.msra.mxu0 0.0
    %193 = vmatprep.subr.mxu0 0.0
    %194 = vmatpush1.msra.mxu0 0.0
    %195 = vmatprep.subr.mxu0 0.0
    %196 = vmatpush1.msra.mxu0 0.0
    %197 = vmatprep.subr.mxu0 0.0
    %198 = vmatpush1.msra.mxu0 0.0
    %199 = vmatprep.subr.mxu0 0.0
    %200 = vmatpush1.msra.mxu0 0.0
    %201 = vmatprep.subr.mxu0 0.0
    %202 = vmatpush1.msra.mxu0 0.0
    %203 = vmatprep.subr.mxu0 0.0
    %204 = vmatpush1.msra.mxu0 0.0
    %205 = vmatprep.subr.mxu0 0.0
    %206 = vmatpush1.msra.mxu0 0.0
    %207 = vmatprep.subr.mxu0 0.0
    %208 = vmatpush1.msra.mxu0 0.0
    %209 = vmatprep.subr.mxu0 0.0
    %210 = vmatpush1.msra.mxu0 0.0
    %211 = vmatprep.subr.mxu0 0.0
    %212 = vmatpush1.msra.mxu0 0.0
    %213 = vmatprep.subr.mxu0 0.0
    %214 = vmatpush1.msra.mxu0 0.0
    %215 = vmatprep.subr.mxu0 0.0
    %216 = vmatpush1.msra.mxu0 0.0
    %217 = vmatprep.subr.mxu0 0.0
    %218 = vmatpush1.msra.mxu0 0.0
    %219 = vmatprep.subr.mxu0 0.0
    %220 = vmatpush1.msra.mxu0 0.0
    %221 = vmatprep.subr.mxu0 0.0
    %222 = vmatpush1.msra.mxu0 0.0
    %223 = vmatprep.mubr.f32.mxu0 0.0
    %224 = vmatmul.mubr.f32.gmra.mrb[0].mxu0 %v138
    %v225 = vpop.f32.mrb[0].mxu0
    %v226 = vadd.f32 %v158, %v225
    %v227 = vpop.f32.mrb[0].mxu0
    %228 = vdwg.mxu0
    %229 = vst [vmem:[#allocation3] sm:$0xff] %v226
    %v230 = vld [vmem:[#allocation13] sm:$0xff]
    %v231 = vld [vmem:[#allocation13 + $0x8] sm:$0xff]
    %v232 = vld [vmem:[#allocation13 + $0x10] sm:$0xff]
    %v233 = vld [vmem:[#allocation13 + $0x18] sm:$0xff]
    %v234 = vlaneseq
    %v235 = vand.u32 %v234, 127
    %vm236 = vcmp.ge.s32.totalorder %v235, 64
    %vm237 = vcmp.lt.s32.totalorder %v235, 96
    %vm238 = vmand %vm236, %vm237
    %v239 = vsel %vm238, 1.0, 0.5
    %v240 = vld [vmem:[%s4] sm:$0x1]
    %v241 = vld [vmem:[%s4 + $0x1] sm:$0x1]
    %v242 = vld [vmem:[#allocation3] sm:$0x1]
    %vm243 = vcmask 261120
    %v245 = vsel %vm243, %v240, 0
    %247 = vmatprep.subr.mxu0 0.0
    %248 = vmatpush1.msra.mxu0 %v230
    %249 = vmatprep.subr.mxu0 0.0
    %250 = vmatpush1.msra.mxu0 %v231
    %251 = vmatprep.subr.mxu0 0.0
    %252 = vmatpush1.msra.mxu0 %v232
    %253 = vmatprep.subr.mxu0 0.0
    %254 = vmatpush1.msra.mxu0 %v233
    %255 = vmatprep.subr.mxu0 0.0
    %256 = vmatpush1.msra.mxu0 0.0
    %257 = vmatprep.subr.mxu0 0.0
    %258 = vmatpush1.msra.mxu0 0.0
    %259 = vmatprep.subr.mxu0 0.0
    %260 = vmatpush1.msra.mxu0 0.0
    %261 = vmatprep.subr.mxu0 0.0
    %262 = vmatpush1.msra.mxu0 0.0
    %263 = vmatprep.subr.mxu0 0.0
    %264 = vmatpush1.msra.mxu0 0.0
    %265 = vmatprep.subr.mxu0 0.0
    %266 = vmatpush1.msra.mxu0 0.0
    %267 = vmatprep.subr.mxu0 0.0
    %268 = vmatpush1.msra.mxu0 0.0
    %269 = vmatprep.subr.mxu0 0.0
    %270 = vmatpush1.msra.mxu0 0.0
    %271 = vmatprep.subr.mxu0 0.0
    %272 = vmatpush1.msra.mxu0 0.0
    %273 = vmatprep.subr.mxu0 0.0
    %274 = vmatpush1.msra.mxu0 0.0
    %275 = vmatprep.subr.mxu0 0.0
    %276 = vmatpush1.msra.mxu0 0.0
    %277 = vmatprep.subr.mxu0 0.0
    %278 = vmatpush1.msra.mxu0 0.0
    %279 = vmatprep.subr.mxu0 0.0
    %280 = vmatpush1.msra.mxu0 0.0
    %281 = vmatprep.subr.mxu0 0.0
    %282 = vmatpush1.msra.mxu0 0.0
    %283 = vmatprep.subr.mxu0 0.0
    %284 = vmatpush1.msra.mxu0 0.0
    %285 = vmatprep.subr.mxu0 0.0
    %286 = vmatpush1.msra.mxu0 0.0
    %287 = vmatprep.subr.mxu0 0.0
    %288 = vmatpush1.msra.mxu0 0.0
    %289 = vmatprep.subr.mxu0 0.0
    %290 = vmatpush1.msra.mxu0 0.0
    %291 = vmatprep.subr.mxu0 0.0
    %292 = vmatpush1.msra.mxu0 0.0
    %293 = vmatprep.subr.mxu0 0.0
    %294 = vmatpush1.msra.mxu0 0.0
    %295 = vmatprep.subr.mxu0 0.0
    %296 = vmatpush1.msra.mxu0 0.0
    %297 = vmatprep.subr.mxu0 0.0
    %298 = vmatpush1.msra.mxu0 0.0
    %299 = vmatprep.subr.mxu0 0.0
    %300 = vmatpush1.msra.mxu0 0.0
    %301 = vmatprep.subr.mxu0 0.0
    %302 = vmatpush1.msra.mxu0 0.0
    %303 = vmatprep.subr.mxu0 0.0
    %304 = vmatpush1.msra.mxu0 0.0
    %305 = vmatprep.subr.mxu0 0.0
    %306 = vmatpush1.msra.mxu0 0.0
    %307 = vmatprep.subr.mxu0 0.0
    %308 = vmatpush1.msra.mxu0 0.0
    %309 = vmatprep.subr.mxu0 0.0
    %310 = vmatpush1.msra.mxu0 0.0
    %311 = vmatprep.mubr.f32.mxu0 0.0
    %312 = vmatmul.mubr.f32.gmra.mrb[0].mxu0 %v245
    %v313 = vpop.f32.mrb[0].mxu0
    %v314 = vadd.f32 0.0, %v313
    %v315 = vpop.f32.mrb[0].mxu0
    %316 = vdwg.mxu0
    %v317 = vadd.f32 %v242, %v314
    %v318 = vmul.f32 %v317, %v239
    %v319 = vtanh.pop %v318
    %v320 = vadd.f32 %v319, 1.0
    %v321 = vmul.f32 %v320, 0.5
    %323 = vrot.lane.b32.xlu0 %v241, 32
    %v324 = vpop.permute.xlu0 %323
    %v326 = vmul.f32 %v321, %v324
    %328 = vrot.lane.b32.xlu0 %v319, 64
    %v329 = vpop.permute.xlu0 %328
    %v331 = vmul.f32 %v321, %v329
    %333 = vrot.lane.b32.xlu0 %v331, 32
    %v334 = vpop.permute.xlu0 %333
    %v336 = vadd.f32 %v326, %v334
    %v337 = vtanh.pop %v336
    %339 = vrot.lane.b32.xlu0 %v337, 64
    %v340 = vpop.permute.xlu0 %339
    %v342 = vmul.f32 %v321, %v340
    %344 = vrot.lane.b32.xlu0 %v342, 32
    %v345 = vpop.permute.xlu0 %344
    %vm347 = vcmask 253952
    %348 = vst.msk [vmem:[#allocation4] sm:$0x1] %vm347, %v345
    %v349 = vld [vmem:[#allocation3 + $0x1] sm:$0x1]
    %v350 = vsel %vm243, %v345, 0
    %352 = vmatprep.subr.mxu0 0.0
    %353 = vmatpush1.msra.mxu0 %v230
    %354 = vmatprep.subr.mxu0 0.0
    %355 = vmatpush1.msra.mxu0 %v231
    %356 = vmatprep.subr.mxu0 0.0
    %357 = vmatpush1.msra.mxu0 %v232
    %358 = vmatprep.subr.mxu0 0.0
    %359 = vmatpush1.msra.mxu0 %v233
    %360 = vmatprep.subr.mxu0 0.0
    %361 = vmatpush1.msra.mxu0 0.0
    %362 = vmatprep.subr.mxu0 0.0
    %363 = vmatpush1.msra.mxu0 0.0
    %364 = vmatprep.subr.mxu0 0.0
    %365 = vmatpush1.msra.mxu0 0.0
    %366 = vmatprep.subr.mxu0 0.0
    %367 = vmatpush1.msra.mxu0 0.0
    %368 = vmatprep.subr.mxu0 0.0
    %369 = vmatpush1.msra.mxu0 0.0
    %370 = vmatprep.subr.mxu0 0.0
    %371 = vmatpush1.msra.mxu0 0.0
    %372 = vmatprep.subr.mxu0 0.0
    %373 = vmatpush1.msra.mxu0 0.0
    %374 = vmatprep.subr.mxu0 0.0
    %375 = vmatpush1.msra.mxu0 0.0
    %376 = vmatprep.subr.mxu0 0.0
    %377 = vmatpush1.msra.mxu0 0.0
    %378 = vmatprep.subr.mxu0 0.0
    %379 = vmatpush1.msra.mxu0 0.0
    %380 = vmatprep.subr.mxu0 0.0
    %381 = vmatpush1.msra.mxu0 0.0
    %382 = vmatprep.subr.mxu0 0.0
    %383 = vmatpush1.msra.mxu0 0.0
    %384 = vmatprep.subr.mxu0 0.0
    %385 = vmatpush1.msra.mxu0 0.0
    %386 = vmatprep.subr.mxu0 0.0
    %387 = vmatpush1.msra.mxu0 0.0
    %388 = vmatprep.subr.mxu0 0.0
    %389 = vmatpush1.msra.mxu0 0.0
    %390 = vmatprep.subr.mxu0 0.0
    %391 = vmatpush1.msra.mxu0 0.0
    %392 = vmatprep.subr.mxu0 0.0
    %393 = vmatpush1.msra.mxu0 0.0
    %394 = vmatprep.subr.mxu0 0.0
    %395 = vmatpush1.msra.mxu0 0.0
    %396 = vmatprep.subr.mxu0 0.0
    %397 = vmatpush1.msra.mxu0 0.0
    %398 = vmatprep.subr.mxu0 0.0
    %399 = vmatpush1.msra.mxu0 0.0
    %400 = vmatprep.subr.mxu0 0.0
    %401 = vmatpush1.msra.mxu0 0.0
    %402 = vmatprep.subr.mxu0 0.0
    %403 = vmatpush1.msra.mxu0 0.0
    %404 = vmatprep.subr.mxu0 0.0
    %405 = vmatpush1.msra.mxu0 0.0
    %406 = vmatprep.subr.mxu0 0.0
    %407 = vmatpush1.msra.mxu0 0.0
    %408 = vmatprep.subr.mxu0 0.0
    %409 = vmatpush1.msra.mxu0 0.0
    %410 = vmatprep.subr.mxu0 0.0
    %411 = vmatpush1.msra.mxu0 0.0
    %412 = vmatprep.subr.mxu0 0.0
    %413 = vmatpush1.msra.mxu0 0.0
    %414 = vmatprep.subr.mxu0 0.0
    %415 = vmatpush1.msra.mxu0 0.0
    %416 = vmatprep.mubr.f32.mxu0 0.0
    %417 = vmatmul.mubr.f32.gmra.mrb[0].mxu0 %v350
    %v418 = vpop.f32.mrb[0].mxu0
    %v419 = vadd.f32 0.0, %v418
    %v420 = vpop.f32.mrb[0].mxu0
    %421 = vdwg.mxu0
    %v422 = vadd.f32 %v349, %v419
    %v423 = vmul.f32 %v422, %v239
    %v424 = vtanh.pop %v423
    %v425 = vadd.f32 %v424, 1.0
    %v426 = vmul.f32 %v425, 0.5
    %v427 = vmul.f32 %v426, %v336
    %429 = vrot.lane.b32.xlu0 %v424, 64
    %v430 = vpop.permute.xlu0 %429
    %v432 = vmul.f32 %v426, %v430
    %434 = vrot.lane.b32.xlu0 %v432, 32
    %v435 = vpop.permute.xlu0 %434
    %v437 = vadd.f32 %v427, %v435
    %v438 = vtanh.pop %v437
    %440 = vrot.lane.b32.xlu0 %v438, 64
    %v441 = vpop.permute.xlu0 %440
    %v443 = vmul.f32 %v426, %v441
    %445 = vrot.lane.b32.xlu0 %v443, 32
    %v446 = vpop.permute.xlu0 %445
    %448 = vst.msk [vmem:[#allocation4 + $0x1] sm:$0x1] %vm347, %v446
    %v449 = vld [vmem:[#allocation3 + $0x2] sm:$0x1]
    %v450 = vsel %vm243, %v446, 0
    %452 = vmatprep.subr.mxu0 0.0
    %453 = vmatpush1.msra.mxu0 %v230
    %454 = vmatprep.subr.mxu0 0.0
    %455 = vmatpush1.msra.mxu0 %v231
    %456 = vmatprep.subr.mxu0 0.0
    %457 = vmatpush1.msra.mxu0 %v232
    %458 = vmatprep.subr.mxu0 0.0
    %459 = vmatpush1.msra.mxu0 %v233
    %460 = vmatprep.subr.mxu0 0.0
    %461 = vmatpush1.msra.mxu0 0.0
    %462 = vmatprep.subr.mxu0 0.0
    %463 = vmatpush1.msra.mxu0 0.0
    %464 = vmatprep.subr.mxu0 0.0
    %465 = vmatpush1.msra.mxu0 0.0
    %466 = vmatprep.subr.mxu0 0.0
    %467 = vmatpush1.msra.mxu0 0.0
    %468 = vmatprep.subr.mxu0 0.0
    %469 = vmatpush1.msra.mxu0 0.0
    %470 = vmatprep.subr.mxu0 0.0
    %471 = vmatpush1.msra.mxu0 0.0
    %472 = vmatprep.subr.mxu0 0.0
    %473 = vmatpush1.msra.mxu0 0.0
    %474 = vmatprep.subr.mxu0 0.0
    %475 = vmatpush1.msra.mxu0 0.0
    %476 = vmatprep.subr.mxu0 0.0
    %477 = vmatpush1.msra.mxu0 0.0
    %478 = vmatprep.subr.mxu0 0.0
    %479 = vmatpush1.msra.mxu0 0.0
    %480 = vmatprep.subr.mxu0 0.0
    %481 = vmatpush1.msra.mxu0 0.0
    %482 = vmatprep.subr.mxu0 0.0
    %483 = vmatpush1.msra.mxu0 0.0
    %484 = vmatprep.subr.mxu0 0.0
    %485 = vmatpush1.msra.mxu0 0.0
    %486 = vmatprep.subr.mxu0 0.0
    %487 = vmatpush1.msra.mxu0 0.0
    %488 = vmatprep.subr.mxu0 0.0
    %489 = vmatpush1.msra.mxu0 0.0
    %490 = vmatprep.subr.mxu0 0.0
    %491 = vmatpush1.msra.mxu0 0.0
    %492 = vmatprep.subr.mxu0 0.0
    %493 = vmatpush1.msra.mxu0 0.0
    %494 = vmatprep.subr.mxu0 0.0
    %495 = vmatpush1.msra.mxu0 0.0
    %496 = vmatprep.subr.mxu0 0.0
    %497 = vmatpush1.msra.mxu0 0.0
    %498 = vmatprep.subr.mxu0 0.0
    %499 = vmatpush1.msra.mxu0 0.0
    %500 = vmatprep.subr.mxu0 0.0
    %501 = vmatpush1.msra.mxu0 0.0
    %502 = vmatprep.subr.mxu0 0.0
    %503 = vmatpush1.msra.mxu0 0.0
    %504 = vmatprep.subr.mxu0 0.0
    %505 = vmatpush1.msra.mxu0 0.0
    %506 = vmatprep.subr.mxu0 0.0
    %507 = vmatpush1.msra.mxu0 0.0
    %508 = vmatprep.subr.mxu0 0.0
    %509 = vmatpush1.msra.mxu0 0.0
    %510 = vmatprep.subr.mxu0 0.0
    %511 = vmatpush1.msra.mxu0 0.0
    %512 = vmatprep.subr.mxu0 0.0
    %513 = vmatpush1.msra.mxu0 0.0
    %514 = vmatprep.subr.mxu0 0.0
    %515 = vmatpush1.msra.mxu0 0.0
    %516 = vmatprep.mubr.f32.mxu0 0.0
    %517 = vmatmul.mubr.f32.gmra.mrb[0].mxu0 %v450
    %v518 = vpop.f32.mrb[0].mxu0
    %v519 = vadd.f32 0.0, %v518
    %v520 = vpop.f32.mrb[0].mxu0
    %521 = vdwg.mxu0
    %v522 = vadd.f32 %v449, %v519
    %v523 = vmul.f32 %v522, %v239
    %v524 = vtanh.pop %v523
    %v525 = vadd.f32 %v524, 1.0
    %v526 = vmul.f32 %v525, 0.5
    %v527 = vmul.f32 %v526, %v437
    %529 = vrot.lane.b32.xlu0 %v524, 64
    %v530 = vpop.permute.xlu0 %529
    %v532 = vmul.f32 %v526, %v530
    %534 = vrot.lane.b32.xlu0 %v532, 32
    %v535 = vpop.permute.xlu0 %534
    %v537 = vadd.f32 %v527, %v535
    %v538 = vtanh.pop %v537
    %540 = vrot.lane.b32.xlu0 %v538, 64
    %v541 = vpop.permute.xlu0 %540
    %v543 = vmul.f32 %v526, %v541
    %545 = vrot.lane.b32.xlu0 %v543, 32
    %v546 = vpop.permute.xlu0 %545
    %548 = vst.msk [vmem:[#allocation4 + $0x2] sm:$0x1] %vm347, %v546
    %v549 = vld [vmem:[#allocation3 + $0x3] sm:$0x1]
    %v550 = vsel %vm243, %v546, 0
    %552 = vmatprep.subr.mxu0 0.0
    %553 = vmatpush1.msra.mxu0 %v230
    %554 = vmatprep.subr.mxu0 0.0
    %555 = vmatpush1.msra.mxu0 %v231
    %556 = vmatprep.subr.mxu0 0.0
    %557 = vmatpush1.msra.mxu0 %v232
    %558 = vmatprep.subr.mxu0 0.0
    %559 = vmatpush1.msra.mxu0 %v233
    %560 = vmatprep.subr.mxu0 0.0
    %561 = vmatpush1.msra.mxu0 0.0
    %562 = vmatprep.subr.mxu0 0.0
    %563 = vmatpush1.msra.mxu0 0.0
    %564 = vmatprep.subr.mxu0 0.0
    %565 = vmatpush1.msra.mxu0 0.0
    %566 = vmatprep.subr.mxu0 0.0
    %567 = vmatpush1.msra.mxu0 0.0
    %568 = vmatprep.subr.mxu0 0.0
    %569 = vmatpush1.msra.mxu0 0.0
    %570 = vmatprep.subr.mxu0 0.0
    %571 = vmatpush1.msra.mxu0 0.0
    %572 = vmatprep.subr.mxu0 0.0
    %573 = vmatpush1.msra.mxu0 0.0
    %574 = vmatprep.subr.mxu0 0.0
    %575 = vmatpush1.msra.mxu0 0.0
    %576 = vmatprep.subr.mxu0 0.0
    %577 = vmatpush1.msra.mxu0 0.0
    %578 = vmatprep.subr.mxu0 0.0
    %579 = vmatpush1.msra.mxu0 0.0
    %580 = vmatprep.subr.mxu0 0.0
    %581 = vmatpush1.msra.mxu0 0.0
    %582 = vmatprep.subr.mxu0 0.0
    %583 = vmatpush1.msra.mxu0 0.0
    %584 = vmatprep.subr.mxu0 0.0
    %585 = vmatpush1.msra.mxu0 0.0
    %586 = vmatprep.subr.mxu0 0.0
    %587 = vmatpush1.msra.mxu0 0.0
    %588 = vmatprep.subr.mxu0 0.0
    %589 = vmatpush1.msra.mxu0 0.0
    %590 = vmatprep.subr.mxu0 0.0
    %591 = vmatpush1.msra.mxu0 0.0
    %592 = vmatprep.subr.mxu0 0.0
    %593 = vmatpush1.msra.mxu0 0.0
    %594 = vmatprep.subr.mxu0 0.0
    %595 = vmatpush1.msra.mxu0 0.0
    %596 = vmatprep.subr.mxu0 0.0
    %597 = vmatpush1.msra.mxu0 0.0
    %598 = vmatprep.subr.mxu0 0.0
    %599 = vmatpush1.msra.mxu0 0.0
    %600 = vmatprep.subr.mxu0 0.0
    %601 = vmatpush1.msra.mxu0 0.0
    %602 = vmatprep.subr.mxu0 0.0
    %603 = vmatpush1.msra.mxu0 0.0
    %604 = vmatprep.subr.mxu0 0.0
    %605 = vmatpush1.msra.mxu0 0.0
    %606 = vmatprep.subr.mxu0 0.0
    %607 = vmatpush1.msra.mxu0 0.0
    %608 = vmatprep.subr.mxu0 0.0
    %609 = vmatpush1.msra.mxu0 0.0
    %610 = vmatprep.subr.mxu0 0.0
    %611 = vmatpush1.msra.mxu0 0.0
    %612 = vmatprep.subr.mxu0 0.0
    %613 = vmatpush1.msra.mxu0 0.0
    %614 = vmatprep.subr.mxu0 0.0
    %615 = vmatpush1.msra.mxu0 0.0
    %616 = vmatprep.mubr.f32.mxu0 0.0
    %617 = vmatmul.mubr.f32.gmra.mrb[0].mxu0 %v550
    %v618 = vpop.f32.mrb[0].mxu0
    %v619 = vadd.f32 0.0, %v618
    %v620 = vpop.f32.mrb[0].mxu0
    %621 = vdwg.mxu0
    %v622 = vadd.f32 %v549, %v619
    %v623 = vmul.f32 %v622, %v239
    %v624 = vtanh.pop %v623
    %v625 = vadd.f32 %v624, 1.0
    %v626 = vmul.f32 %v625, 0.5
    %v627 = vmul.f32 %v626, %v537
    %629 = vrot.lane.b32.xlu0 %v624, 64
    %v630 = vpop.permute.xlu0 %629
    %v632 = vmul.f32 %v626, %v630
    %634 = vrot.lane.b32.xlu0 %v632, 32
    %v635 = vpop.permute.xlu0 %634
    %v637 = vadd.f32 %v627, %v635
    %v638 = vtanh.pop %v637
    %640 = vrot.lane.b32.xlu0 %v638, 64
    %v641 = vpop.permute.xlu0 %640
    %v643 = vmul.f32 %v626, %v641
    %645 = vrot.lane.b32.xlu0 %v643, 32
    %v646 = vpop.permute.xlu0 %645
    %648 = vst.msk [vmem:[#allocation4 + $0x3] sm:$0x1] %vm347, %v646
    %v649 = vld [vmem:[#allocation3 + $0x4] sm:$0x1]
    %v650 = vsel %vm243, %v646, 0
    %652 = vmatprep.subr.mxu0 0.0
    %653 = vmatpush1.msra.mxu0 %v230
    %654 = vmatprep.subr.mxu0 0.0
    %655 = vmatpush1.msra.mxu0 %v231
    %656 = vmatprep.subr.mxu0 0.0
    %657 = vmatpush1.msra.mxu0 %v232
    %658 = vmatprep.subr.mxu0 0.0
    %659 = vmatpush1.msra.mxu0 %v233
    %660 = vmatprep.subr.mxu0 0.0
    %661 = vmatpush1.msra.mxu0 0.0
    %662 = vmatprep.subr.mxu0 0.0
    %663 = vmatpush1.msra.mxu0 0.0
    %664 = vmatprep.subr.mxu0 0.0
    %665 = vmatpush1.msra.mxu0 0.0
    %666 = vmatprep.subr.mxu0 0.0
    %667 = vmatpush1.msra.mxu0 0.0
    %668 = vmatprep.subr.mxu0 0.0
    %669 = vmatpush1.msra.mxu0 0.0
    %670 = vmatprep.subr.mxu0 0.0
    %671 = vmatpush1.msra.mxu0 0.0
    %672 = vmatprep.subr.mxu0 0.0
    %673 = vmatpush1.msra.mxu0 0.0
    %674 = vmatprep.subr.mxu0 0.0
    %675 = vmatpush1.msra.mxu0 0.0
    %676 = vmatprep.subr.mxu0 0.0
    %677 = vmatpush1.msra.mxu0 0.0
    %678 = vmatprep.subr.mxu0 0.0
    %679 = vmatpush1.msra.mxu0 0.0
    %680 = vmatprep.subr.mxu0 0.0
    %681 = vmatpush1.msra.mxu0 0.0
    %682 = vmatprep.subr.mxu0 0.0
    %683 = vmatpush1.msra.mxu0 0.0
    %684 = vmatprep.subr.mxu0 0.0
    %685 = vmatpush1.msra.mxu0 0.0
    %686 = vmatprep.subr.mxu0 0.0
    %687 = vmatpush1.msra.mxu0 0.0
    %688 = vmatprep.subr.mxu0 0.0
    %689 = vmatpush1.msra.mxu0 0.0
    %690 = vmatprep.subr.mxu0 0.0
    %691 = vmatpush1.msra.mxu0 0.0
    %692 = vmatprep.subr.mxu0 0.0
    %693 = vmatpush1.msra.mxu0 0.0
    %694 = vmatprep.subr.mxu0 0.0
    %695 = vmatpush1.msra.mxu0 0.0
    %696 = vmatprep.subr.mxu0 0.0
    %697 = vmatpush1.msra.mxu0 0.0
    %698 = vmatprep.subr.mxu0 0.0
    %699 = vmatpush1.msra.mxu0 0.0
    %700 = vmatprep.subr.mxu0 0.0
    %701 = vmatpush1.msra.mxu0 0.0
    %702 = vmatprep.subr.mxu0 0.0
    %703 = vmatpush1.msra.mxu0 0.0
    %704 = vmatprep.subr.mxu0 0.0
    %705 = vmatpush1.msra.mxu0 0.0
    %706 = vmatprep.subr.mxu0 0.0
    %707 = vmatpush1.msra.mxu0 0.0
    %708 = vmatprep.subr.mxu0 0.0
    %709 = vmatpush1.msra.mxu0 0.0
    %710 = vmatprep.subr.mxu0 0.0
    %711 = vmatpush1.msra.mxu0 0.0
    %712 = vmatprep.subr.mxu0 0.0
    %713 = vmatpush1.msra.mxu0 0.0
    %714 = vmatprep.subr.mxu0 0.0
    %715 = vmatpush1.msra.mxu0 0.0
    %716 = vmatprep.mubr.f32.mxu0 0.0
    %717 = vmatmul.mubr.f32.gmra.mrb[0].mxu0 %v650
    %v718 = vpop.f32.mrb[0].mxu0
    %v719 = vadd.f32 0.0, %v718
    %v720 = vpop.f32.mrb[0].mxu0
    %721 = vdwg.mxu0
    %v722 = vadd.f32 %v649, %v719
    %v723 = vmul.f32 %v722, %v239
    %v724 = vtanh.pop %v723
    %v725 = vadd.f32 %v724, 1.0
    %v726 = vmul.f32 %v725, 0.5
    %v727 = vmul.f32 %v726, %v637
    %729 = vrot.lane.b32.xlu0 %v724, 64
    %v730 = vpop.permute.xlu0 %729
    %v732 = vmul.f32 %v726, %v730
    %734 = vrot.lane.b32.xlu0 %v732, 32
    %v735 = vpop.permute.xlu0 %734
    %v737 = vadd.f32 %v727, %v735
    %v738 = vtanh.pop %v737
    %740 = vrot.lane.b32.xlu0 %v738, 64
    %v741 = vpop.permute.xlu0 %740
    %v743 = vmul.f32 %v726, %v741
    %745 = vrot.lane.b32.xlu0 %v743, 32
    %v746 = vpop.permute.xlu0 %745
    %748 = vst.msk [vmem:[#allocation4 + $0x4] sm:$0x1] %vm347, %v746
    %v749 = vld [vmem:[#allocation3 + $0x5] sm:$0x1]
    %v750 = vsel %vm243, %v746, 0
    %752 = vmatprep.subr.mxu0 0.0
    %753 = vmatpush1.msra.mxu0 %v230
    %754 = vmatprep.subr.mxu0 0.0
    %755 = vmatpush1.msra.mxu0 %v231
    %756 = vmatprep.subr.mxu0 0.0
    %757 = vmatpush1.msra.mxu0 %v232
    %758 = vmatprep.subr.mxu0 0.0
    %759 = vmatpush1.msra.mxu0 %v233
    %760 = vmatprep.subr.mxu0 0.0
    %761 = vmatpush1.msra.mxu0 0.0
    %762 = vmatprep.subr.mxu0 0.0
    %763 = vmatpush1.msra.mxu0 0.0
    %764 = vmatprep.subr.mxu0 0.0
    %765 = vmatpush1.msra.mxu0 0.0
    %766 = vmatprep.subr.mxu0 0.0
    %767 = vmatpush1.msra.mxu0 0.0
    %768 = vmatprep.subr.mxu0 0.0
    %769 = vmatpush1.msra.mxu0 0.0
    %770 = vmatprep.subr.mxu0 0.0
    %771 = vmatpush1.msra.mxu0 0.0
    %772 = vmatprep.subr.mxu0 0.0
    %773 = vmatpush1.msra.mxu0 0.0
    %774 = vmatprep.subr.mxu0 0.0
    %775 = vmatpush1.msra.mxu0 0.0
    %776 = vmatprep.subr.mxu0 0.0
    %777 = vmatpush1.msra.mxu0 0.0
    %778 = vmatprep.subr.mxu0 0.0
    %779 = vmatpush1.msra.mxu0 0.0
    %780 = vmatprep.subr.mxu0 0.0
    %781 = vmatpush1.msra.mxu0 0.0
    %782 = vmatprep.subr.mxu0 0.0
    %783 = vmatpush1.msra.mxu0 0.0
    %784 = vmatprep.subr.mxu0 0.0
    %785 = vmatpush1.msra.mxu0 0.0
    %786 = vmatprep.subr.mxu0 0.0
    %787 = vmatpush1.msra.mxu0 0.0
    %788 = vmatprep.subr.mxu0 0.0
    %789 = vmatpush1.msra.mxu0 0.0
    %790 = vmatprep.subr.mxu0 0.0
    %791 = vmatpush1.msra.mxu0 0.0
    %792 = vmatprep.subr.mxu0 0.0
    %793 = vmatpush1.msra.mxu0 0.0
    %794 = vmatprep.subr.mxu0 0.0
    %795 = vmatpush1.msra.mxu0 0.0
    %796 = vmatprep.subr.mxu0 0.0
    %797 = vmatpush1.msra.mxu0 0.0
    %798 = vmatprep.subr.mxu0 0.0
    %799 = vmatpush1.msra.mxu0 0.0
    %800 = vmatprep.subr.mxu0 0.0
    %801 = vmatpush1.msra.mxu0 0.0
    %802 = vmatprep.subr.mxu0 0.0
    %803 = vmatpush1.msra.mxu0 0.0
    %804 = vmatprep.subr.mxu0 0.0
    %805 = vmatpush1.msra.mxu0 0.0
    %806 = vmatprep.subr.mxu0 0.0
    %807 = vmatpush1.msra.mxu0 0.0
    %808 = vmatprep.subr.mxu0 0.0
    %809 = vmatpush1.msra.mxu0 0.0
    %810 = vmatprep.subr.mxu0 0.0
    %811 = vmatpush1.msra.mxu0 0.0
    %812 = vmatprep.subr.mxu0 0.0
    %813 = vmatpush1.msra.mxu0 0.0
    %814 = vmatprep.subr.mxu0 0.0
    %815 = vmatpush1.msra.mxu0 0.0
    %816 = vmatprep.mubr.f32.mxu0 0.0
    %817 = vmatmul.mubr.f32.gmra.mrb[0].mxu0 %v750
    %v818 = vpop.f32.mrb[0].mxu0
    %v819 = vadd.f32 0.0, %v818
    %v820 = vpop.f32.mrb[0].mxu0
    %821 = vdwg.mxu0
    %v822 = vadd.f32 %v749, %v819
    %v823 = vmul.f32 %v822, %v239
    %v824 = vtanh.pop %v823
    %v825 = vadd.f32 %v824, 1.0
    %v826 = vmul.f32 %v825, 0.5
    %v827 = vmul.f32 %v826, %v737
    %829 = vrot.lane.b32.xlu0 %v824, 64
    %v830 = vpop.permute.xlu0 %829
    %v832 = vmul.f32 %v826, %v830
    %834 = vrot.lane.b32.xlu0 %v832, 32
    %v835 = vpop.permute.xlu0 %834
    %v837 = vadd.f32 %v827, %v835
    %v838 = vtanh.pop %v837
    %840 = vrot.lane.b32.xlu0 %v838, 64
    %v841 = vpop.permute.xlu0 %840
    %v843 = vmul.f32 %v826, %v841
    %845 = vrot.lane.b32.xlu0 %v843, 32
    %v846 = vpop.permute.xlu0 %845
    %848 = vst.msk [vmem:[#allocation4 + $0x5] sm:$0x1] %vm347, %v846
    %v849 = vld [vmem:[#allocation3 + $0x6] sm:$0x1]
    %v850 = vsel %vm243, %v846, 0
    %852 = vmatprep.subr.mxu0 0.0
    %853 = vmatpush1.msra.mxu0 %v230
    %854 = vmatprep.subr.mxu0 0.0
    %855 = vmatpush1.msra.mxu0 %v231
    %856 = vmatprep.subr.mxu0 0.0
    %857 = vmatpush1.msra.mxu0 %v232
    %858 = vmatprep.subr.mxu0 0.0
    %859 = vmatpush1.msra.mxu0 %v233
    %860 = vmatprep.subr.mxu0 0.0
    %861 = vmatpush1.msra.mxu0 0.0
    %862 = vmatprep.subr.mxu0 0.0
    %863 = vmatpush1.msra.mxu0 0.0
    %864 = vmatprep.subr.mxu0 0.0
    %865 = vmatpush1.msra.mxu0 0.0
    %866 = vmatprep.subr.mxu0 0.0
    %867 = vmatpush1.msra.mxu0 0.0
    %868 = vmatprep.subr.mxu0 0.0
    %869 = vmatpush1.msra.mxu0 0.0
    %870 = vmatprep.subr.mxu0 0.0
    %871 = vmatpush1.msra.mxu0 0.0
    %872 = vmatprep.subr.mxu0 0.0
    %873 = vmatpush1.msra.mxu0 0.0
    %874 = vmatprep.subr.mxu0 0.0
    %875 = vmatpush1.msra.mxu0 0.0
    %876 = vmatprep.subr.mxu0 0.0
    %877 = vmatpush1.msra.mxu0 0.0
    %878 = vmatprep.subr.mxu0 0.0
    %879 = vmatpush1.msra.mxu0 0.0
    %880 = vmatprep.subr.mxu0 0.0
    %881 = vmatpush1.msra.mxu0 0.0
    %882 = vmatprep.subr.mxu0 0.0
    %883 = vmatpush1.msra.mxu0 0.0
    %884 = vmatprep.subr.mxu0 0.0
    %885 = vmatpush1.msra.mxu0 0.0
    %886 = vmatprep.subr.mxu0 0.0
    %887 = vmatpush1.msra.mxu0 0.0
    %888 = vmatprep.subr.mxu0 0.0
    %889 = vmatpush1.msra.mxu0 0.0
    %890 = vmatprep.subr.mxu0 0.0
    %891 = vmatpush1.msra.mxu0 0.0
    %892 = vmatprep.subr.mxu0 0.0
    %893 = vmatpush1.msra.mxu0 0.0
    %894 = vmatprep.subr.mxu0 0.0
    %895 = vmatpush1.msra.mxu0 0.0
    %896 = vmatprep.subr.mxu0 0.0
    %897 = vmatpush1.msra.mxu0 0.0
    %898 = vmatprep.subr.mxu0 0.0
    %899 = vmatpush1.msra.mxu0 0.0
    %900 = vmatprep.subr.mxu0 0.0
    %901 = vmatpush1.msra.mxu0 0.0
    %902 = vmatprep.subr.mxu0 0.0
    %903 = vmatpush1.msra.mxu0 0.0
    %904 = vmatprep.subr.mxu0 0.0
    %905 = vmatpush1.msra.mxu0 0.0
    %906 = vmatprep.subr.mxu0 0.0
    %907 = vmatpush1.msra.mxu0 0.0
    %908 = vmatprep.subr.mxu0 0.0
    %909 = vmatpush1.msra.mxu0 0.0
    %910 = vmatprep.subr.mxu0 0.0
    %911 = vmatpush1.msra.mxu0 0.0
    %912 = vmatprep.subr.mxu0 0.0
    %913 = vmatpush1.msra.mxu0 0.0
    %914 = vmatprep.subr.mxu0 0.0
    %915 = vmatpush1.msra.mxu0 0.0
    %916 = vmatprep.mubr.f32.mxu0 0.0
    %917 = vmatmul.mubr.f32.gmra.mrb[0].mxu0 %v850
    %v918 = vpop.f32.mrb[0].mxu0
    %v919 = vadd.f32 0.0, %v918
    %v920 = vpop.f32.mrb[0].mxu0
    %921 = vdwg.mxu0
    %v922 = vadd.f32 %v849, %v919
    %v923 = vmul.f32 %v922, %v239
    %v924 = vtanh.pop %v923
    %v925 = vadd.f32 %v924, 1.0
    %v926 = vmul.f32 %v925, 0.5
    %v927 = vmul.f32 %v926, %v837
    %929 = vrot.lane.b32.xlu0 %v924, 64
    %v930 = vpop.permute.xlu0 %929
    %v932 = vmul.f32 %v926, %v930
    %934 = vrot.lane.b32.xlu0 %v932, 32
    %v935 = vpop.permute.xlu0 %934
    %v937 = vadd.f32 %v927, %v935
    %v938 = vtanh.pop %v937
    %940 = vrot.lane.b32.xlu0 %v938, 64
    %v941 = vpop.permute.xlu0 %940
    %v943 = vmul.f32 %v926, %v941
    %945 = vrot.lane.b32.xlu0 %v943, 32
    %v946 = vpop.permute.xlu0 %945
    %948 = vst.msk [vmem:[#allocation4 + $0x6] sm:$0x1] %vm347, %v946
    %v949 = vld [vmem:[#allocation3 + $0x7] sm:$0x1]
    %v950 = vsel %vm243, %v946, 0
    %952 = vmatprep.subr.mxu0 0.0
    %953 = vmatpush1.msra.mxu0 %v230
    %954 = vmatprep.subr.mxu0 0.0
    %955 = vmatpush1.msra.mxu0 %v231
    %956 = vmatprep.subr.mxu0 0.0
    %957 = vmatpush1.msra.mxu0 %v232
    %958 = vmatprep.subr.mxu0 0.0
    %959 = vmatpush1.msra.mxu0 %v233
    %960 = vmatprep.subr.mxu0 0.0
    %961 = vmatpush1.msra.mxu0 0.0
    %962 = vmatprep.subr.mxu0 0.0
    %963 = vmatpush1.msra.mxu0 0.0
    %964 = vmatprep.subr.mxu0 0.0
    %965 = vmatpush1.msra.mxu0 0.0
    %966 = vmatprep.subr.mxu0 0.0
    %967 = vmatpush1.msra.mxu0 0.0
    %968 = vmatprep.subr.mxu0 0.0
    %969 = vmatpush1.msra.mxu0 0.0
    %970 = vmatprep.subr.mxu0 0.0
    %971 = vmatpush1.msra.mxu0 0.0
    %972 = vmatprep.subr.mxu0 0.0
    %973 = vmatpush1.msra.mxu0 0.0
    %974 = vmatprep.subr.mxu0 0.0
    %975 = vmatpush1.msra.mxu0 0.0
    %976 = vmatprep.subr.mxu0 0.0
    %977 = vmatpush1.msra.mxu0 0.0
    %978 = vmatprep.subr.mxu0 0.0
    %979 = vmatpush1.msra.mxu0 0.0
    %980 = vmatprep.subr.mxu0 0.0
    %981 = vmatpush1.msra.mxu0 0.0
    %982 = vmatprep.subr.mxu0 0.0
    %983 = vmatpush1.msra.mxu0 0.0
    %984 = vmatprep.subr.mxu0 0.0
    %985 = vmatpush1.msra.mxu0 0.0
    %986 = vmatprep.subr.mxu0 0.0
    %987 = vmatpush1.msra.mxu0 0.0
    %988 = vmatprep.subr.mxu0 0.0
    %989 = vmatpush1.msra.mxu0 0.0
    %990 = vmatprep.subr.mxu0 0.0
    %991 = vmatpush1.msra.mxu0 0.0
    %992 = vmatprep.subr.mxu0 0.0
    %993 = vmatpush1.msra.mxu0 0.0
    %994 = vmatprep.subr.mxu0 0.0
    %995 = vmatpush1.msra.mxu0 0.0
    %996 = vmatprep.subr.mxu0 0.0
    %997 = vmatpush1.msra.mxu0 0.0
    %998 = vmatprep.subr.mxu0 0.0
    %999 = vmatpush1.msra.mxu0 0.0
    %1000 = vmatprep.subr.mxu0 0.0
    %1001 = vmatpush1.msra.mxu0 0.0
    %1002 = vmatprep.subr.mxu0 0.0
    %1003 = vmatpush1.msra.mxu0 0.0
    %1004 = vmatprep.subr.mxu0 0.0
    %1005 = vmatpush1.msra.mxu0 0.0
    %1006 = vmatprep.subr.mxu0 0.0
    %1007 = vmatpush1.msra.mxu0 0.0
    %1008 = vmatprep.subr.mxu0 0.0
    %1009 = vmatpush1.msra.mxu0 0.0
    %1010 = vmatprep.subr.mxu0 0.0
    %1011 = vmatpush1.msra.mxu0 0.0
    %1012 = vmatprep.subr.mxu0 0.0
    %1013 = vmatpush1.msra.mxu0 0.0
    %1014 = vmatprep.subr.mxu0 0.0
    %1015 = vmatpush1.msra.mxu0 0.0
    %1016 = vmatprep.mubr.f32.mxu0 0.0
    %1017 = vmatmul.mubr.f32.gmra.mrb[0].mxu0 %v950
    %v1018 = vpop.f32.mrb[0].mxu0
    %v1019 = vadd.f32 0.0, %v1018
    %v1020 = vpop.f32.mrb[0].mxu0
    %1021 = vdwg.mxu0
    %v1022 = vadd.f32 %v949, %v1019
    %v1023 = vmul.f32 %v1022, %v239
    %v1024 = vtanh.pop %v1023
    %v1025 = vadd.f32 %v1024, 1.0
    %v1026 = vmul.f32 %v1025, 0.5
    %v1027 = vmul.f32 %v1026, %v937
    %1029 = vrot.lane.b32.xlu0 %v1024, 64
    %v1030 = vpop.permute.xlu0 %1029
    %v1032 = vmul.f32 %v1026, %v1030
    %1034 = vrot.lane.b32.xlu0 %v1032, 32
    %v1035 = vpop.permute.xlu0 %1034
    %v1037 = vadd.f32 %v1027, %v1035
    %v1038 = vtanh.pop %v1037
    %1040 = vrot.lane.b32.xlu0 %v1038, 64
    %v1041 = vpop.permute.xlu0 %1040
    %v1043 = vmul.f32 %v1026, %v1041
    %1045 = vrot.lane.b32.xlu0 %v1043, 32
    %v1046 = vpop.permute.xlu0 %1045
    %1048 = vst.msk [vmem:[#allocation4 + $0x7] sm:$0x1] %vm347, %v1046
    %v1050 = vrot.slane %v1037, 7
    %1051 = vrot.lane.b32.xlu0 %v1050, 64
    %v1052 = vpop.permute.xlu0 %1051
    %vm1054 = vcmask 1040384
    %v1055 = vsel %vm1054, %v1043, %v1052
    %1057 = vrot.lane.b32.xlu0 %v1055, 32
    %v1058 = vpop.permute.xlu0 %1057
    %vm1060 = vcmask 254976
    %1061 = vst.msk [vmem:[#allocation17] sm:$0x3] %vm1060, %v1058
    %v1062 = vld [vmem:[%s7 + $0x1] sm:$0x1]
    %v1063 = vld [vmem:[#allocation4] sm:$0xff]
    %v1064 = vld [vmem:[#allocation14] sm:$0xff]
    %v1065 = vld [vmem:[#allocation14 + $0x8] sm:$0xff]
    %v1066 = vld [vmem:[#allocation14 + $0x10] sm:$0xff]
    %v1067 = vld [vmem:[#allocation14 + $0x18] sm:$0xff]
    %v1068 = vlaneseq
    %v1069 = vshrl.u32 %v1068, 7
    %v1070 = vsub.s32 0, %v1069
    %v1071 = vrot.slane %v1062, %v1070
    %v1073 = vsel %vm243, %v1063, 0
    %1075 = vmatprep.subr.mxu0 0.0
    %1076 = vmatpush1.msra.mxu0 %v1064
    %1077 = vmatprep.subr.mxu0 0.0
    %1078 = vmatpush1.msra.mxu0 %v1065
    %1079 = vmatprep.subr.mxu0 0.0
    %1080 = vmatpush1.msra.mxu0 %v1066
    %1081 = vmatprep.subr.mxu0 0.0
    %1082 = vmatpush1.msra.mxu0 %v1067
    %1083 = vmatprep.subr.mxu0 0.0
    %1084 = vmatpush1.msra.mxu0 0.0
    %1085 = vmatprep.subr.mxu0 0.0
    %1086 = vmatpush1.msra.mxu0 0.0
    %1087 = vmatprep.subr.mxu0 0.0
    %1088 = vmatpush1.msra.mxu0 0.0
    %1089 = vmatprep.subr.mxu0 0.0
    %1090 = vmatpush1.msra.mxu0 0.0
    %1091 = vmatprep.subr.mxu0 0.0
    %1092 = vmatpush1.msra.mxu0 0.0
    %1093 = vmatprep.subr.mxu0 0.0
    %1094 = vmatpush1.msra.mxu0 0.0
    %1095 = vmatprep.subr.mxu0 0.0
    %1096 = vmatpush1.msra.mxu0 0.0
    %1097 = vmatprep.subr.mxu0 0.0
    %1098 = vmatpush1.msra.mxu0 0.0
    %1099 = vmatprep.subr.mxu0 0.0
    %1100 = vmatpush1.msra.mxu0 0.0
    %1101 = vmatprep.subr.mxu0 0.0
    %1102 = vmatpush1.msra.mxu0 0.0
    %1103 = vmatprep.subr.mxu0 0.0
    %1104 = vmatpush1.msra.mxu0 0.0
    %1105 = vmatprep.subr.mxu0 0.0
    %1106 = vmatpush1.msra.mxu0 0.0
    %1107 = vmatprep.subr.mxu0 0.0
    %1108 = vmatpush1.msra.mxu0 0.0
    %1109 = vmatprep.subr.mxu0 0.0
    %1110 = vmatpush1.msra.mxu0 0.0
    %1111 = vmatprep.subr.mxu0 0.0
    %1112 = vmatpush1.msra.mxu0 0.0
    %1113 = vmatprep.subr.mxu0 0.0
    %1114 = vmatpush1.msra.mxu0 0.0
    %1115 = vmatprep.subr.mxu0 0.0
    %1116 = vmatpush1.msra.mxu0 0.0
    %1117 = vmatprep.subr.mxu0 0.0
    %1118 = vmatpush1.msra.mxu0 0.0
    %1119 = vmatprep.subr.mxu0 0.0
    %1120 = vmatpush1.msra.mxu0 0.0
    %1121 = vmatprep.subr.mxu0 0.0
    %1122 = vmatpush1.msra.mxu0 0.0
    %1123 = vmatprep.subr.mxu0 0.0
    %1124 = vmatpush1.msra.mxu0 0.0
    %1125 = vmatprep.subr.mxu0 0.0
    %1126 = vmatpush1.msra.mxu0 0.0
    %1127 = vmatprep.subr.mxu0 0.0
    %1128 = vmatpush1.msra.mxu0 0.0
    %1129 = vmatprep.subr.mxu0 0.0
    %1130 = vmatpush1.msra.mxu0 0.0
    %1131 = vmatprep.subr.mxu0 0.0
    %1132 = vmatpush1.msra.mxu0 0.0
    %1133 = vmatprep.subr.mxu0 0.0
    %1134 = vmatpush1.msra.mxu0 0.0
    %1135 = vmatprep.subr.mxu0 0.0
    %1136 = vmatpush1.msra.mxu0 0.0
    %1137 = vmatprep.subr.mxu0 0.0
    %1138 = vmatpush1.msra.mxu0 0.0
    %1139 = vmatprep.mubr.f32.mxu0 0.0
    %1140 = vmatmul.mubr.f32.gmra.mrb[0].mxu0 %v1073
    %v1141 = vpop.f32.mrb[0].mxu0
    %v1142 = vadd.f32 %v1071, %v1141
    %v1143 = vpop.f32.mrb[0].mxu0
    %1144 = vdwg.mxu0
    %1145 = vmax.xlane.f32.xlu0 %v1142
    %v1146 = vpop.xlane.xlu0 %1145
    %v1147 = vsub.f32 %v1142, %v1146
    %v1148 = vmul.f32 %v1147, 1.442695
    %v1149 = vpow.pop %v1148
    %1150 = vadd.xlane.f32.xlu0 %v1149
    %v1151 = vpop.xlane.xlu0 %1150
    %v1152 = vlog2.pop %v1151
    %v1153 = vmul.f32 %v1152, 0.6931472
    %v1154 = vadd.f32 %v1146, %v1153
    %v1155 = vsub.f32 %v1142, %v1154
    %1156 = vst [vmem:[#allocation16] sm:$0xff] %v1155
    // Predicated region
    $region46: #{tpu_custom_call.1} parent=1 // pred_check
      _
    $region47: #{tpu_custom_call.1} parent=1 // pred_check_branch
      %1158 = sbr.rel (0) target = $region49
    $region48: #{tpu_custom_call.1} parent=1 // pred_region
      %s1160 = ssub.s32 128, 128
      %1161 = vsyncadd [#allocation10], %s1160
      %s1163 = sshll.u32 [#allocation16], 4
      %s1164 = int_to_ptr.vmem [resolvable:$true] %s1163
      %1166 = dma.vmem_to_hbm [thread:$0]  %s1164, 128, %s9, [#allocation10]
    $region49: #{tpu_custom_call.1} parent=1 // pred_fallthru
      _
    // Predicated region
    $region50: #{tpu_custom_call.1} parent=1 // pred_check
      _
    $region51: #{tpu_custom_call.1} parent=1 // pred_check_branch
      %1168 = sbr.rel (0) target = $region53
    $region52: #{tpu_custom_call.1} parent=1 // pred_region
      %s1170 = ssub.s32 32, 32
      %1171 = vsyncadd [#allocation18], %s1170
      %s1173 = sshll.u32 [#allocation17], 4
      %s1174 = int_to_ptr.vmem [resolvable:$true] %s1173
      %1176 = dma.vmem_to_hbm [thread:$0]  %s1174, 32, %s10, [#allocation18]
    $region53: #{tpu_custom_call.1} parent=1 // pred_fallthru
      _
    // Predicated region
    $region54: #{tpu_custom_call.1} parent=1 // pred_check
      _
    $region55: #{tpu_custom_call.1} parent=1 // pred_check_branch
      %1178 = sbr.rel (0) target = $region57
    $region56: #{tpu_custom_call.1} parent=1 // pred_region
      %1179 = dma.done [#allocation10], 128
    $region57: #{tpu_custom_call.1} parent=1 // pred_fallthru
      _
    // Predicated region
    $region58: #{tpu_custom_call.1} parent=1 // pred_check
      _
    $region59: #{tpu_custom_call.1} parent=1 // pred_check_branch
      %1181 = sbr.rel (0) target = $region61
    $region60: #{tpu_custom_call.1} parent=1 // pred_region
      %1182 = dma.done [#allocation18], 32
    $region61: #{tpu_custom_call.1} parent=1 // pred_fallthru
      _
    %1183 = vsyncpa [#allocation9], 1
    %1184 = vsyncpa [#allocation12], 1
    %1185 = vsyncpa [#allocation15], 1
    %1186 = vsyncpa [#allocation10], 1
    %1187 = vsyncpa [#allocation18], 1

</llo_original>
